<compile_context>
chip_gen: v7x
topology: tpu7x:2x2x1
jax: 0.10.0
libtpu: 0.0.40
codegen_flags: <defaults>
</compile_context>

<pallas_src>
import functools

import jax
import jax.numpy as jnp
from jax.experimental import pallas as pl
from jax.experimental.pallas import tpu as pltpu

_LANE = 128
_VMEM_LIMIT = 48 * 1024 * 1024  # > default scoped limit everywhere, < v7x physical 64 MiB


def _round_up(x, m):
    return ((x + m - 1) // m) * m


# --------------------------------------------------------------------------------------
# Kernels
# --------------------------------------------------------------------------------------

def _proj_kernel(x_ref, w_ref, o_ref):
    # o = x_tile @ W1.T      (reassociated layer 1: feature projection first, width F -> D)
    o_ref[...] = jnp.dot(
        x_ref[...], w_ref[...], preferred_element_type=jnp.float32
    ).astype(o_ref.dtype)


def _agg_relu_proj_kernel(a_ref, m_ref, w_ref, o_ref):
    # o = relu(A_tile @ xw1) @ W2.T   (layer-1 mean agg + relu, pre-multiplied by the
    # next layer's weight so the N x N matmul stays at inner width D)
    agg = jnp.dot(a_ref[...], m_ref[...], preferred_element_type=jnp.float32)
    h1 = jnp.maximum(agg, 0.0).astype(m_ref.dtype)
    o_ref[...] = jnp.dot(
        h1, w_ref[...], preferred_element_type=jnp.float32
    ).astype(o_ref.dtype)


def _final_kernel(a_ref, m_ref, wc_ref, o_ref):
    # o = sigmoid(relu(A[nodes]_tile @ hw2) @ Wc_pad.T)
    # classifier lanes padded to 128 -> lane-dense f32 output store
    agg = jnp.dot(a_ref[...], m_ref[...], preferred_element_type=jnp.float32)
    h2 = jnp.maximum(agg, 0.0).astype(m_ref.dtype)
    scores = jnp.dot(h2, wc_ref[...], preferred_element_type=jnp.float32)
    o_ref[...] = jax.nn.sigmoid(scores)


# --------------------------------------------------------------------------------------
# Tiled pallas_call helper: one row-tiled operand, remaining operands fully resident.
# --------------------------------------------------------------------------------------

def _tiled_call(kernel, tiled, residents, out_cols, out_dtype, tm):
    rows, cols = tiled.shape
    grid = (rows // tm,)
    in_specs = [pl.BlockSpec((tm, cols), lambda i: (i, 0))]
    in_specs += [pl.BlockSpec(r.shape, lambda i: (0, 0)) for r in residents]
    return pl.pallas_call(
        kernel,
        out_shape=jax.ShapeDtypeStruct((rows, out_cols), out_dtype),
        grid=grid,
        in_specs=in_specs,
        out_specs=pl.BlockSpec((tm, out_cols), lambda i: (i, 0)),
        compiler_params=pltpu.CompilerParams(
            dimension_semantics=("parallel",),
            vmem_limit_bytes=_VMEM_LIMIT,
        ),
    )(tiled, *residents)


# --------------------------------------------------------------------------------------
# Forward pass
# --------------------------------------------------------------------------------------

@functools.partial(jax.jit, static_argnames=("tm", "tb"))
def graphsage_forward(nodes, a_norm, x, w1, w2, wc, *, tm=128, tb=16):
    """forward(nodes) -> sigmoid(Wc @ h2).T[nodes], shape (len(nodes), num_classes)."""
    n, f = x.shape
    d = w1.shape[0]
    c = wc.shape[0]
    b = nodes.shape[0]

    n_pad = _round_up(n, max(tm, _LANE))
    b_pad = _round_up(b, tb)
    c_pad = _round_up(c, _LANE)

    # bf16 inputs halve HBM bytes on the bandwidth-bound N x N adjacency stream.
    # Zero padding is semantically inert (zero adjacency rows/cols, zero feature rows).
    a_bf = jnp.zeros((n_pad, n_pad), jnp.bfloat16).at[:n, :n].set(a_norm.astype(jnp.bfloat16))
    x_bf = jnp.zeros((n_pad, f), jnp.bfloat16).at[:n, :].set(x.astype(jnp.bfloat16))

    # Pre-transposed (in, out) weights -> plain MXU contractions, no in-kernel transposes.
    w1t = w1.T.astype(jnp.bfloat16)                                          # (F, D)
    w2t = w2.T.astype(jnp.bfloat16)                                          # (D, D)
    wct = jnp.zeros((d, c_pad), jnp.bfloat16).at[:, :c].set(wc.T.astype(jnp.bfloat16))  # (D, 128)

    # Stage 1: xw1 = X @ W1.T            (row-tiled over X)
    xw1 = _tiled_call(_proj_kernel, x_bf, [w1t], d, jnp.bfloat16, tm)

    # Stage 2: hw2 = relu(A @ xw1) @ W2.T = h1 @ W2.T   (row-tiled over A, pipelined DMA)
    hw2 = _tiled_call(_agg_relu_proj_kernel, a_bf, [xw1, w2t], d, jnp.bfloat16, tm)

    # Stage 3 (requested nodes only): out = sigmoid(relu(A[nodes] @ hw2) @ Wc.T)
    nodes_pad = jnp.zeros((b_pad,), jnp.int32).at[:b].set(nodes.astype(jnp.int32))
    a_sel = a_bf[nodes_pad]                                                  # (B_pad, N_pad)
    out_pad = _tiled_call(_final_kernel, a_sel, [hw2, wct], c_pad, jnp.float32, tb)

    return out_pad[:b, :c]


def reference_forward(nodes, a_norm, x, w1, w2, wc):
    """Pure-JAX f32 reference with the original (un-reassociated) association."""
    h1 = jax.nn.relu((a_norm @ x) @ w1.T)
    h2 = jax.nn.relu((a_norm @ h1) @ w2.T)
    return jax.nn.sigmoid(h2 @ wc.T)[nodes]


def _xavier_uniform(key, shape):
    fan_out, fan_in = shape
    bound = (6.0 / (fan_in + fan_out)) ** 0.5
    return jax.random.uniform(key, shape, jnp.float32, -bound, bound)


if __name__ == "__main__":
    # Small deterministic problem (also exercises the padding paths: 500 -> 512, 12 -> 16).
    NUM_NODES, NUM_FEATS, EMBED_DIM, NUM_CLASSES = 500, 128, 64, 8
    BATCH = 12

    key = jax.random.PRNGKey(0)
    k_feat, k_adj, k_w1, k_w2, k_wc, k_nodes = jax.random.split(key, 6)

    # Node features (the frozen nn.Embedding weight in the reference).
    features = jax.random.normal(k_feat, (NUM_NODES, NUM_FEATS), jnp.float32)

    # Random symmetric adjacency with ring edges so every node has >= 1 neighbor.
    rand_adj = jax.random.bernoulli(k_adj, 0.05, (NUM_NODES, NUM_NODES))
    rand_adj = jnp.logical_or(rand_adj, rand_adj.T)
    idx = jnp.arange(NUM_NODES)
    ring = jnp.zeros((NUM_NODES, NUM_NODES), bool).at[idx, (idx + 1) % NUM_NODES].set(True)
    adj = jnp.logical_or(jnp.logical_or(rand_adj, ring), ring.T)
    adj = adj.at[idx, idx].set(False)                    # no self loops (aggregator gcn=False)
    adj = adj.astype(jnp.float32)
    deg = jnp.sum(adj, axis=1, keepdims=True)
    a_norm = adj / deg                                   # row-normalized mean aggregator

    # Encoder / classifier weights (xavier_uniform, PyTorch (out, in) layout).
    w1 = _xavier_uniform(k_w1, (EMBED_DIM, NUM_FEATS))   # encoders[0].weight
    w2 = _xavier_uniform(k_w2, (EMBED_DIM, EMBED_DIM))   # encoders[1].weight
    wc = _xavier_uniform(k_wc, (NUM_CLASSES, EMBED_DIM)) # SupervisedGraphSage.weight

    # Batch of node ids to classify.
    nodes = jax.random.permutation(k_nodes, NUM_NODES)[:BATCH]

    out = graphsage_forward(nodes, a_norm, features, w1, w2, wc)
    out = jax.block_until_ready(out)

    ref = reference_forward(nodes, a_norm, features, w1, w2, wc)
    max_err = float(jnp.max(jnp.abs(out - ref)))

    assert out.shape == (BATCH, NUM_CLASSES)
    assert bool(jnp.all(jnp.isfinite(out))) and bool(jnp.all((out >= 0) & (out <= 1)))
    assert max_err < 0.08, f"max abs err vs f32 reference too large: {max_err}"
    print("KERNEL_OK")
</pallas_src>

<mosaic_0001>
module attributes {stable_mosaic.version = 11 : i64} {
  func.func @_proj_kernel(%arg0: i32, %arg1: memref<128x128xbf16, #tpu.memory_space<vmem>>, %arg2: memref<128x64xbf16, #tpu.memory_space<vmem>>, %arg3: memref<128x64xbf16, #tpu.memory_space<vmem>>) attributes {dimension_semantics = [#tpu.dimension_semantics<parallel>], iteration_bounds = array<i64: 4>, scalar_prefetch = 0 : i64, scratch_operands = 0 : i64, tpu.core_type = #tpu.core_type<tc>, window_params = [{transform_indices = @transform_0, window_bounds = array<i64: 128, 128>}, {pipeline_mode = #tpu.pipeline_mode<synchronous>, transform_indices = @transform_1, window_bounds = array<i64: 128, 64>}, {transform_indices = @transform_2, window_bounds = array<i64: 128, 64>}]} {
    %c0 = arith.constant 0 : index
    %c0_0 = arith.constant 0 : index
    %0 = vector.load %arg1[%c0, %c0_0] : memref<128x128xbf16, #tpu.memory_space<vmem>>, vector<128x128xbf16>
    %c0_1 = arith.constant 0 : index
    %c0_2 = arith.constant 0 : index
    %1 = vector.load %arg2[%c0_1, %c0_2] : memref<128x64xbf16, #tpu.memory_space<vmem>>, vector<128x64xbf16>
    %cst = arith.constant dense<0.000000e+00> : vector<128x64xf32>
    %2 = tpu.matmul %0, %1, %cst {dimension_numbers = #tpu.dot_dimension_numbers<[1], [0], [0], [1], [0, 0, 1, 1], [], []>} : vector<128x128xbf16>, vector<128x64xbf16>, vector<128x64xf32> -> vector<128x64xf32>
    %3 = arith.truncf %2 : vector<128x64xf32> to vector<128x64xbf16>
    %c0_3 = arith.constant 0 : index
    %c0_4 = arith.constant 0 : index
    %4 = vector.load %arg3[%c0_3, %c0_4] : memref<128x64xbf16, #tpu.memory_space<vmem>>, vector<128x64xbf16>
    tpu.vector_store %arg3[%c0_3, %c0_4], %3 {strides = array<i32>} : memref<128x64xbf16, #tpu.memory_space<vmem>>, vector<128x64xbf16>,
    return
  }
  func.func @transform_0(%arg0: i32) -> (i32, i32) {
    %c0_i32 = arith.constant 0 : i32
    %c0_i32_0 = arith.constant 0 : i32
    return %arg0, %c0_i32 : i32, i32
  }
  func.func @transform_1(%arg0: i32) -> (i32, i32) {
    %c0_i32 = arith.constant 0 : i32
    %c0_i32_0 = arith.constant 0 : i32
    %c0_i32_1 = arith.constant 0 : i32
    return %c0_i32, %c0_i32_0 : i32, i32
  }
  func.func @transform_2(%arg0: i32) -> (i32, i32) {
    %c0_i32 = arith.constant 0 : i32
    %c0_i32_0 = arith.constant 0 : i32
    return %arg0, %c0_i32 : i32, i32
  }
}

module attributes {stable_mosaic.version = 11 : i64} {
  func.func @_agg_relu_proj_kernel(%arg0: i32, %arg1: memref<128x512xbf16, #tpu.memory_space<vmem>>, %arg2: memref<512x64xbf16, #tpu.memory_space<vmem>>, %arg3: memref<64x64xbf16, #tpu.memory_space<vmem>>, %arg4: memref<128x64xbf16, #tpu.memory_space<vmem>>) attributes {dimension_semantics = [#tpu.dimension_semantics<parallel>], iteration_bounds = array<i64: 4>, scalar_prefetch = 0 : i64, scratch_operands = 0 : i64, tpu.core_type = #tpu.core_type<tc>, window_params = [{transform_indices = @transform_0, window_bounds = array<i64: 128, 512>}, {pipeline_mode = #tpu.pipeline_mode<synchronous>, transform_indices = @transform_1, window_bounds = array<i64: 512, 64>}, {pipeline_mode = #tpu.pipeline_mode<synchronous>, transform_indices = @transform_2, window_bounds = array<i64: 64, 64>}, {transform_indices = @transform_3, window_bounds = array<i64: 128, 64>}]} {
    %c0 = arith.constant 0 : index
    %c0_0 = arith.constant 0 : index
    %0 = vector.load %arg1[%c0, %c0_0] : memref<128x512xbf16, #tpu.memory_space<vmem>>, vector<128x512xbf16>
    %c0_1 = arith.constant 0 : index
    %c0_2 = arith.constant 0 : index
    %1 = vector.load %arg2[%c0_1, %c0_2] : memref<512x64xbf16, #tpu.memory_space<vmem>>, vector<512x64xbf16>
    %cst = arith.constant dense<0.000000e+00> : vector<128x64xf32>
    %2 = tpu.matmul %0, %1, %cst {dimension_numbers = #tpu.dot_dimension_numbers<[1], [0], [0], [1], [0, 0, 1, 1], [], []>} : vector<128x512xbf16>, vector<512x64xbf16>, vector<128x64xf32> -> vector<128x64xf32>
    %cst_3 = arith.constant 0.000000e+00 : f32
    %3 = vector.broadcast %cst_3 : f32 to vector<128x64xf32>
    %4 = arith.maximumf %2, %3 : vector<128x64xf32>
    %5 = arith.truncf %4 : vector<128x64xf32> to vector<128x64xbf16>
    %c0_4 = arith.constant 0 : index
    %c0_5 = arith.constant 0 : index
    %6 = vector.load %arg3[%c0_4, %c0_5] : memref<64x64xbf16, #tpu.memory_space<vmem>>, vector<64x64xbf16>
    %cst_6 = arith.constant dense<0.000000e+00> : vector<128x64xf32>
    %7 = tpu.matmul %5, %6, %cst_6 {dimension_numbers = #tpu.dot_dimension_numbers<[1], [0], [0], [1], [0, 0, 1, 1], [], []>} : vector<128x64xbf16>, vector<64x64xbf16>, vector<128x64xf32> -> vector<128x64xf32>
    %8 = arith.truncf %7 : vector<128x64xf32> to vector<128x64xbf16>
    %c0_7 = arith.constant 0 : index
    %c0_8 = arith.constant 0 : index
    %9 = vector.load %arg4[%c0_7, %c0_8] : memref<128x64xbf16, #tpu.memory_space<vmem>>, vector<128x64xbf16>
    tpu.vector_store %arg4[%c0_7, %c0_8], %8 {strides = array<i32>} : memref<128x64xbf16, #tpu.memory_space<vmem>>, vector<128x64xbf16>,
    return
  }
  func.func @transform_0(%arg0: i32) -> (i32, i32) {
    %c0_i32 = arith.constant 0 : i32
    %c0_i32_0 = arith.constant 0 : i32
    return %arg0, %c0_i32 : i32, i32
  }
  func.func @transform_1(%arg0: i32) -> (i32, i32) {
    %c0_i32 = arith.constant 0 : i32
    %c0_i32_0 = arith.constant 0 : i32
    %c0_i32_1 = arith.constant 0 : i32
    return %c0_i32, %c0_i32_0 : i32, i32
  }
  func.func @transform_2(%arg0: i32) -> (i32, i32) {
    %c0_i32 = arith.constant 0 : i32
    %c0_i32_0 = arith.constant 0 : i32
    %c0_i32_1 = arith.constant 0 : i32
    return %c0_i32, %c0_i32_0 : i32, i32
  }
  func.func @transform_3(%arg0: i32) -> (i32, i32) {
    %c0_i32 = arith.constant 0 : i32
    %c0_i32_0 = arith.constant 0 : i32
    return %arg0, %c0_i32 : i32, i32
  }
}

module attributes {stable_mosaic.version = 11 : i64} {
  func.func @_final_kernel(%arg0: i32, %arg1: memref<16x512xbf16, #tpu.memory_space<vmem>>, %arg2: memref<512x64xbf16, #tpu.memory_space<vmem>>, %arg3: memref<64x128xbf16, #tpu.memory_space<vmem>>, %arg4: memref<16x128xf32, #tpu.memory_space<vmem>>) attributes {dimension_semantics = [#tpu.dimension_semantics<parallel>], iteration_bounds = array<i64: 1>, scalar_prefetch = 0 : i64, scratch_operands = 0 : i64, tpu.core_type = #tpu.core_type<tc>, window_params = [{transform_indices = @transform_0, window_bounds = array<i64: 16, 512>}, {pipeline_mode = #tpu.pipeline_mode<synchronous>, transform_indices = @transform_1, window_bounds = array<i64: 512, 64>}, {pipeline_mode = #tpu.pipeline_mode<synchronous>, transform_indices = @transform_2, window_bounds = array<i64: 64, 128>}, {transform_indices = @transform_3, window_bounds = array<i64: 16, 128>}]} {
    %c0 = arith.constant 0 : index
    %c0_0 = arith.constant 0 : index
    %0 = vector.load %arg1[%c0, %c0_0] : memref<16x512xbf16, #tpu.memory_space<vmem>>, vector<16x512xbf16>
    %c0_1 = arith.constant 0 : index
    %c0_2 = arith.constant 0 : index
    %1 = vector.load %arg2[%c0_1, %c0_2] : memref<512x64xbf16, #tpu.memory_space<vmem>>, vector<512x64xbf16>
    %cst = arith.constant dense<0.000000e+00> : vector<16x64xf32>
    %2 = tpu.matmul %0, %1, %cst {dimension_numbers = #tpu.dot_dimension_numbers<[1], [0], [0], [1], [0, 0, 1, 1], [], []>} : vector<16x512xbf16>, vector<512x64xbf16>, vector<16x64xf32> -> vector<16x64xf32>
    %cst_3 = arith.constant 0.000000e+00 : f32
    %3 = vector.broadcast %cst_3 : f32 to vector<16x64xf32>
    %4 = arith.maximumf %2, %3 : vector<16x64xf32>
    %5 = arith.truncf %4 : vector<16x64xf32> to vector<16x64xbf16>
    %c0_4 = arith.constant 0 : index
    %c0_5 = arith.constant 0 : index
    %6 = vector.load %arg3[%c0_4, %c0_5] : memref<64x128xbf16, #tpu.memory_space<vmem>>, vector<64x128xbf16>
    %cst_6 = arith.constant dense<0.000000e+00> : vector<16x128xf32>
    %7 = tpu.matmul %5, %6, %cst_6 {dimension_numbers = #tpu.dot_dimension_numbers<[1], [0], [0], [1], [0, 0, 1, 1], [], []>} : vector<16x64xbf16>, vector<64x128xbf16>, vector<16x128xf32> -> vector<16x128xf32>
    %8 = arith.negf %7 : vector<16x128xf32>
    %9 = math.exp %8 : vector<16x128xf32>
    %cst_7 = arith.constant 1.000000e+00 : f32
    %10 = vector.broadcast %cst_7 : f32 to vector<16x128xf32>
    %11 = arith.addf %10, %9 : vector<16x128xf32>
    %12 = arith.divf %10, %11 : vector<16x128xf32>
    %c0_8 = arith.constant 0 : index
    %c0_9 = arith.constant 0 : index
    %13 = vector.load %arg4[%c0_8, %c0_9] : memref<16x128xf32, #tpu.memory_space<vmem>>, vector<16x128xf32>
    tpu.vector_store %arg4[%c0_8, %c0_9], %12 {strides = array<i32>} : memref<16x128xf32, #tpu.memory_space<vmem>>, vector<16x128xf32>,
    return
  }
  func.func @transform_0(%arg0: i32) -> (i32, i32) {
    %c0_i32 = arith.constant 0 : i32
    %c0_i32_0 = arith.constant 0 : i32
    return %arg0, %c0_i32 : i32, i32
  }
  func.func @transform_1(%arg0: i32) -> (i32, i32) {
    %c0_i32 = arith.constant 0 : i32
    %c0_i32_0 = arith.constant 0 : i32
    %c0_i32_1 = arith.constant 0 : i32
    return %c0_i32, %c0_i32_0 : i32, i32
  }
  func.func @transform_2(%arg0: i32) -> (i32, i32) {
    %c0_i32 = arith.constant 0 : i32
    %c0_i32_0 = arith.constant 0 : i32
    %c0_i32_1 = arith.constant 0 : i32
    return %c0_i32, %c0_i32_0 : i32, i32
  }
  func.func @transform_3(%arg0: i32) -> (i32, i32) {
    %c0_i32 = arith.constant 0 : i32
    %c0_i32_0 = arith.constant 0 : i32
    return %arg0, %c0_i32 : i32, i32
  }
}

</mosaic_0001>

<llo_original>
// kernel: graphsage_forward.3
$region0: #{graphsage_forward.3}
  #allocation0 [shape = 'u32[]', space=smem, size = 0x4, offset = 0x4, fixed_abs, tag = 'smem constant byte address 0x4 - core index']
  #allocation1 [shape = 'u32[144,128]{1,0:T(1,128)}', space=vmem, size = 0x12000, scoped, tag = 'internal scratch']
  %s0 = inlined_call_operand.vmem [shape: bf16[512,128], index: 0, kind: input, shape index: {}]
  %s1 = inlined_call_operand.vmem [shape: bf16[128,64], index: 1, kind: input, shape index: {}]
  %s2 = inlined_call_operand.vmem [shape: bf16[512,64], index: 2, kind: output, shape index: {}]
  %s3 = sld [smem:[#allocation0]]
  $region41: #{graphsage_forward.3} parent=0
    _
  %s5 = ssub.s32 1, %s3
  %s6 = scalar_select 0, %s5, %s3
  loop: start=0, step=1, limit=6
  $region2: #{graphsage_forward.3} parent=0 // loop_pre_header
    _
  $region3: #{graphsage_forward.3} parent=0 // loop_header
    %s8 = sphi 0, %s12
    %p9 = scmp.ge.s32.totalorder %s8, 6
    %s18 = sphi 0, %s20
    %s21 = sphi 0, %s18
    %s22 = sphi 0, %s21
    %s38 = sphi 0, %s22
    %s42 = sphi 0, %s42
    %s44 = sphi 0, %s42
    %s45 = sphi 0, %s44
    %s59 = sphi 0, %s45
    %s65 = sphi 0, %s67
    %s68 = sphi 0, %s65
    %s69 = sphi 0, %s68
    %s85 = sphi 0, %s69
  $region4: #{graphsage_forward.3} parent=0 // loop_header_branch
    %11 = sbr.rel (%p9) target = $region8
  $region5: #{graphsage_forward.3} parent=0 // loop_body
    %s13 = ssub.s32 %s8, 1
    %s14 = ssub.s32 %s8, 2
    %s15 = sadd.s32 %s8, 1
    %s16 = ssub.s32 %s8, %s15
    %p17 = scmp.eq.s32.totalorder %s16, 0
    %s19 = sadd.s32 %s18, 1
    %s20 = scalar_select %p17, %s18, %s19
    %p23 = pneg %p17
    %p24 = scmp.eq.s32.totalorder %s8, 3
    %p25 = por %p23, %p24
    %p26 = scmp.ne.s32.totalorder %s18, %s21
    %p27 = scmp.eq.s32.totalorder %s8, 0
    %p28 = por %p26, %p27
    %p29 = scmp.ne.s32.totalorder %s18, %s21
    %p30 = scmp.eq.s32.totalorder %s13, 3
    %p31 = por %p29, %p30
    %p32 = scmp.ne.s32.totalorder %s21, %s22
    %p33 = scmp.eq.s32.totalorder %s13, 0
    %p34 = por %p32, %p33
    %p35 = scmp.ne.s32.totalorder %s21, %s22
    %p36 = scmp.eq.s32.totalorder %s14, 3
    %p37 = por %p35, %p36
    %p39 = scmp.ne.s32.totalorder %s22, %s38
    %p40 = scmp.eq.s32.totalorder %s14, 0
    %p41 = por %p39, %p40
    %s43 = sadd.s32 %s42, 1
    %p46 = scmp.eq.s32.totalorder %s8, 3
    %p47 = scmp.ne.s32.totalorder %s42, %s44
    %p48 = scmp.eq.s32.totalorder %s8, 0
    %p49 = por %p47, %p48
    %p50 = scmp.ne.s32.totalorder %s42, %s44
    %p51 = scmp.eq.s32.totalorder %s13, 3
    %p52 = por %p50, %p51
    %p53 = scmp.ne.s32.totalorder %s44, %s45
    %p54 = scmp.eq.s32.totalorder %s13, 0
    %p55 = por %p53, %p54
    %p56 = scmp.ne.s32.totalorder %s44, %s45
    %p57 = scmp.eq.s32.totalorder %s14, 3
    %p58 = por %p56, %p57
    %p60 = scmp.ne.s32.totalorder %s45, %s59
    %p61 = scmp.eq.s32.totalorder %s14, 0
    %p62 = por %p60, %p61
    %s63 = ssub.s32 %s8, %s15
    %p64 = scmp.eq.s32.totalorder %s63, 0
    %s66 = sadd.s32 %s65, 1
    %s67 = scalar_select %p64, %s65, %s66
    %p70 = pneg %p64
    %p71 = scmp.eq.s32.totalorder %s8, 3
    %p72 = por %p70, %p71
    %p73 = scmp.ne.s32.totalorder %s65, %s68
    %p74 = scmp.eq.s32.totalorder %s8, 0
    %p75 = por %p73, %p74
    %p76 = scmp.ne.s32.totalorder %s65, %s68
    %p77 = scmp.eq.s32.totalorder %s13, 3
    %p78 = por %p76, %p77
    %p79 = scmp.ne.s32.totalorder %s68, %s69
    %p80 = scmp.eq.s32.totalorder %s13, 0
    %p81 = por %p79, %p80
    %p82 = scmp.ne.s32.totalorder %s68, %s69
    %p83 = scmp.eq.s32.totalorder %s14, 3
    %p84 = por %p82, %p83
    %p86 = scmp.ne.s32.totalorder %s69, %s85
    %p87 = scmp.eq.s32.totalorder %s14, 0
    %p88 = por %p86, %p87
    %p89 = scmp.le.s32.totalorder 1, %s8
    %p90 = scmp.lt.s32.totalorder %s8, 5
    %p91 = pnand %p89, %p90
    %p92 = pneg %p91
    // Predicated region
    $region9: #{graphsage_forward.3} parent=5 // pred_check
      _
    $region10: #{graphsage_forward.3} parent=5 // pred_check_branch
      %94 = sbr.rel (%p91) target = $region12
    $region11: #{graphsage_forward.3} parent=5 // pred_region
      %s95 = ssub.s32 %s8, 1
      // Predicated region
      $region13: #{graphsage_forward.3} parent=11 // pred_check
        %p96 = pneg %p55
      $region14: #{graphsage_forward.3} parent=11 // pred_check_branch
        %98 = sbr.rel (%p96) target = $region16
      $region15: #{graphsage_forward.3} parent=11 // pred_region
        _
      $region16: #{graphsage_forward.3} parent=11 // pred_fallthru
        _
    $region12: #{graphsage_forward.3} parent=5 // pred_fallthru
      _
    %p99 = scmp.lt.s32.totalorder %s8, 4
    // Predicated region
    $region17: #{graphsage_forward.3} parent=5 // pred_check
      %p100 = pneg %p99
    $region18: #{graphsage_forward.3} parent=5 // pred_check_branch
      %102 = sbr.rel (%p100) target = $region20
    $region19: #{graphsage_forward.3} parent=5 // pred_region
      // Predicated region
      $region21: #{graphsage_forward.3} parent=19 // pred_check
        %p103 = pneg %p28
      $region22: #{graphsage_forward.3} parent=19 // pred_check_branch
        %105 = sbr.rel (%p103) target = $region24
      $region23: #{graphsage_forward.3} parent=19 // pred_region
        %s106 = smul.u32 16, %s8
        %p107 = scmp.lt.s32.totalorder %s106, 63
        %s108 = scalar_select %p107, %s106, 63
        %s109 = smul.addr %s108, 4
        %s110 = scalar_lea.vmem %s0, %s109
        %s111 = smul.u32 16, %s8
      $region24: #{graphsage_forward.3} parent=19 // pred_fallthru
        _
    $region20: #{graphsage_forward.3} parent=5 // pred_fallthru
      _
    %p112 = scmp.le.s32.totalorder 1, %s8
    %p113 = scmp.lt.s32.totalorder %s8, 5
    %p114 = pnand %p112, %p113
    %p115 = pneg %p114
    // Predicated region
    $region25: #{graphsage_forward.3} parent=5 // pred_check
      _
    $region26: #{graphsage_forward.3} parent=5 // pred_check_branch
      %117 = sbr.rel (%p114) target = $region28
    $region27: #{graphsage_forward.3} parent=5 // pred_region
      %s118 = ssub.s32 %s8, 1
      %s119 = smul.u32 16, %s13
      %p120 = scmp.lt.s32.totalorder %s119, 63
      %s121 = scalar_select %p120, %s119, 63
      %s122 = smul.addr %s121, 4
      %s123 = scalar_lea.vmem %s0, %s122
      %p124 = pneg %p34
      %p125 = pneg %p31
      %p126 = pneg %p55
      %p127 = pneg %p52
      %p128 = pneg %p81
      %p129 = pneg %p78
      %s130 = smul.u32 16, %s13
      %p131 = scmp.lt.s32.totalorder %s130, 63
      %s132 = scalar_select %p131, %s130, 63
      %s133 = smul.addr %s132, 4
      %s134 = scalar_lea.vmem %s2, %s133
      %s135 = smul.u32 16, %s13
      %p136 = scmp.lt.s32.totalorder %s135, 63
      %s137 = scalar_select %p136, %s135, 63
      %s138 = smul.addr %s137, 4
      %s139 = scalar_lea.vmem %s0, %s138
      %s140 = smul.u32 16, %s13
      %s141 = smul.u32 16, %s13
      %p142 = scmp.lt.s32.totalorder %s141, 63
      %s143 = scalar_select %p142, %s141, 63
      %s144 = smul.addr %s143, 4
      %s145 = scalar_lea.vmem %s2, %s144
      %s146 = smul.u32 16, %s13
      %v148 = vld [vmem:[%s139] sm:$0xf]
      %v149 = vld [vmem:[%s139 + $0x4] sm:$0xf]
      %v150 = vld [vmem:[%s139 + $0x8] sm:$0xf]
      %v151 = vld [vmem:[%s139 + $0xc] sm:$0xf]
      %v152 = vld [vmem:[%s139 + $0x10] sm:$0xf]
      %v153 = vld [vmem:[%s139 + $0x14] sm:$0xf]
      %v154 = vld [vmem:[%s139 + $0x18] sm:$0xf]
      %v155 = vld [vmem:[%s139 + $0x1c] sm:$0xf]
      %v156 = vld [vmem:[%s139 + $0x20] sm:$0xf]
      %v157 = vld [vmem:[%s139 + $0x24] sm:$0xf]
      %v158 = vld [vmem:[%s139 + $0x28] sm:$0xf]
      %v159 = vld [vmem:[%s139 + $0x2c] sm:$0xf]
      %v160 = vld [vmem:[%s139 + $0x30] sm:$0xf]
      %v161 = vld [vmem:[%s139 + $0x34] sm:$0xf]
      %v162 = vld [vmem:[%s139 + $0x38] sm:$0xf]
      %v163 = vld [vmem:[%s139 + $0x3c] sm:$0xf]
      %v164 = vld [vmem:[%s1] sm:$0xf]
      %v165 = vld [vmem:[%s1 + $0x4] sm:$0xf]
      %v166 = vld [vmem:[%s1 + $0x8] sm:$0xf]
      %v167 = vld [vmem:[%s1 + $0xc] sm:$0xf]
      %v168 = vld [vmem:[%s1 + $0x10] sm:$0xf]
      %v169 = vld [vmem:[%s1 + $0x14] sm:$0xf]
      %v170 = vld [vmem:[%s1 + $0x18] sm:$0xf]
      %v171 = vld [vmem:[%s1 + $0x1c] sm:$0xf]
      %v172 = vld [vmem:[%s1 + $0x20] sm:$0xf]
      %v173 = vld [vmem:[%s1 + $0x24] sm:$0xf]
      %v174 = vld [vmem:[%s1 + $0x28] sm:$0xf]
      %v175 = vld [vmem:[%s1 + $0x2c] sm:$0xf]
      %v176 = vld [vmem:[%s1 + $0x30] sm:$0xf]
      %v177 = vld [vmem:[%s1 + $0x34] sm:$0xf]
      %v178 = vld [vmem:[%s1 + $0x38] sm:$0xf]
      %v179 = vld [vmem:[%s1 + $0x3c] sm:$0xf]
      %v196 = vunpack.c.l.b16 %v148
      %v197 = vunpack.c.l.b16 %v149
      %v198 = vunpack.c.l.b16 %v150
      %v199 = vunpack.c.l.b16 %v151
      %v200 = vunpack.c.l.b16 %v152
      %v201 = vunpack.c.l.b16 %v153
      %v202 = vunpack.c.l.b16 %v154
      %v203 = vunpack.c.l.b16 %v155
      %v204 = vunpack.c.l.b16 %v156
      %v205 = vunpack.c.l.b16 %v157
      %v206 = vunpack.c.l.b16 %v158
      %v207 = vunpack.c.l.b16 %v159
      %v208 = vunpack.c.l.b16 %v160
      %v209 = vunpack.c.l.b16 %v161
      %v210 = vunpack.c.l.b16 %v162
      %v211 = vunpack.c.l.b16 %v163
      %v212 = vpack.c.b16 %v197, %v196
      %v213 = vpack.c.b16 %v199, %v198
      %v214 = vpack.c.b16 %v201, %v200
      %v215 = vpack.c.b16 %v203, %v202
      %v216 = vpack.c.b16 %v205, %v204
      %v217 = vpack.c.b16 %v207, %v206
      %v218 = vpack.c.b16 %v209, %v208
      %v219 = vpack.c.b16 %v211, %v210
      %v244 = vunpack.c.l.b16 %v164
      %v245 = vunpack.c.l.b16 %v165
      %v246 = vunpack.c.l.b16 %v166
      %v247 = vunpack.c.l.b16 %v167
      %v248 = vunpack.c.l.b16 %v168
      %v249 = vunpack.c.l.b16 %v169
      %v250 = vunpack.c.l.b16 %v170
      %v251 = vunpack.c.l.b16 %v171
      %v252 = vunpack.c.l.b16 %v172
      %v253 = vunpack.c.l.b16 %v173
      %v254 = vunpack.c.l.b16 %v174
      %v255 = vunpack.c.l.b16 %v175
      %v256 = vunpack.c.l.b16 %v176
      %v257 = vunpack.c.l.b16 %v177
      %v258 = vunpack.c.l.b16 %v178
      %v259 = vunpack.c.l.b16 %v179
      %v260 = vpack.c.b16 %v245, %v244
      %v261 = vpack.c.b16 %v247, %v246
      %v262 = vpack.c.b16 %v249, %v248
      %v263 = vpack.c.b16 %v251, %v250
      %v264 = vpack.c.b16 %v253, %v252
      %v265 = vpack.c.b16 %v255, %v254
      %v266 = vpack.c.b16 %v257, %v256
      %v267 = vpack.c.b16 %v259, %v258
      %276 = vmatprep.subr.bf16.mxu0 0
      %277 = vmatpush1.bf16.msra.mxu0 %v260
      %278 = vmatprep.subr.bf16.mxu0 0
      %279 = vmatpush1.bf16.msra.mxu0 %v261
      %280 = vmatprep.subr.bf16.mxu0 0
      %281 = vmatpush1.bf16.msra.mxu0 %v262
      %282 = vmatprep.subr.bf16.mxu0 0
      %283 = vmatpush1.bf16.msra.mxu0 %v263
      %284 = vmatprep.subr.bf16.mxu0 0
      %285 = vmatpush1.bf16.msra.mxu0 %v264
      %286 = vmatprep.subr.bf16.mxu0 0
      %287 = vmatpush1.bf16.msra.mxu0 %v265
      %288 = vmatprep.subr.bf16.mxu0 0
      %289 = vmatpush1.bf16.msra.mxu0 %v266
      %290 = vmatprep.subr.bf16.mxu0 0
      %291 = vmatpush1.bf16.msra.mxu0 %v267
      %292 = vmatprep.subr.bf16.mxu0 0
      %293 = vmatpush1.bf16.msra.mxu0 0
      %294 = vmatprep.subr.bf16.mxu0 0
      %295 = vmatpush1.bf16.msra.mxu0 0
      %296 = vmatprep.subr.bf16.mxu0 0
      %297 = vmatpush1.bf16.msra.mxu0 0
      %298 = vmatprep.subr.bf16.mxu0 0
      %299 = vmatpush1.bf16.msra.mxu0 0
      %300 = vmatprep.subr.bf16.mxu0 0
      %301 = vmatpush1.bf16.msra.mxu0 0
      %302 = vmatprep.subr.bf16.mxu0 0
      %303 = vmatpush1.bf16.msra.mxu0 0
      %304 = vmatprep.subr.bf16.mxu0 0
      %305 = vmatpush1.bf16.msra.mxu0 0
      %306 = vmatprep.subr.bf16.mxu0 0
      %307 = vmatpush1.bf16.msra.mxu0 0
      %308 = vmatprep.mubr.bf16.mxu0 0
      %309 = vmatmul.mubr.bf16.gmra.mrb[0].mxu0 %v212
      %v310 = vpop.f32.mrb[0].mxu0
      %v311 = vadd.f32 0.0, %v310
      %v312 = vpop.f32.mrb[0].mxu0
      %v313 = vpop.f32.mrb[0].mxu0
      %v314 = vadd.f32 0.0, %v313
      %v315 = vpop.f32.mrb[0].mxu0
      %316 = vmatprep.mubr.bf16.mxu0 0
      %317 = vmatmul.mubr.bf16.gmra.mrb[0].mxu0 %v213
      %v318 = vpop.f32.mrb[0].mxu0
      %v319 = vadd.f32 0.0, %v318
      %v320 = vpop.f32.mrb[0].mxu0
      %v321 = vpop.f32.mrb[0].mxu0
      %v322 = vadd.f32 0.0, %v321
      %v323 = vpop.f32.mrb[0].mxu0
      %324 = vmatprep.mubr.bf16.mxu0 0
      %325 = vmatmul.mubr.bf16.gmra.mrb[0].mxu0 %v214
      %v326 = vpop.f32.mrb[0].mxu0
      %v327 = vadd.f32 0.0, %v326
      %v328 = vpop.f32.mrb[0].mxu0
      %v329 = vpop.f32.mrb[0].mxu0
      %v330 = vadd.f32 0.0, %v329
      %v331 = vpop.f32.mrb[0].mxu0
      %332 = vmatprep.mubr.bf16.mxu0 0
      %333 = vmatmul.mubr.bf16.gmra.mrb[0].mxu0 %v215
      %v334 = vpop.f32.mrb[0].mxu0
      %v335 = vadd.f32 0.0, %v334
      %v336 = vpop.f32.mrb[0].mxu0
      %v337 = vpop.f32.mrb[0].mxu0
      %v338 = vadd.f32 0.0, %v337
      %v339 = vpop.f32.mrb[0].mxu0
      %340 = vmatprep.mubr.bf16.mxu0 0
      %341 = vmatmul.mubr.bf16.gmra.mrb[0].mxu0 %v216
      %v342 = vpop.f32.mrb[0].mxu0
      %v343 = vadd.f32 0.0, %v342
      %v344 = vpop.f32.mrb[0].mxu0
      %v345 = vpop.f32.mrb[0].mxu0
      %v346 = vadd.f32 0.0, %v345
      %v347 = vpop.f32.mrb[0].mxu0
      %348 = vmatprep.mubr.bf16.mxu0 0
      %349 = vmatmul.mubr.bf16.gmra.mrb[0].mxu0 %v217
      %v350 = vpop.f32.mrb[0].mxu0
      %v351 = vadd.f32 0.0, %v350
      %v352 = vpop.f32.mrb[0].mxu0
      %v353 = vpop.f32.mrb[0].mxu0
      %v354 = vadd.f32 0.0, %v353
      %v355 = vpop.f32.mrb[0].mxu0
      %356 = vmatprep.mubr.bf16.mxu0 0
      %357 = vmatmul.mubr.bf16.gmra.mrb[0].mxu0 %v218
      %v358 = vpop.f32.mrb[0].mxu0
      %v359 = vadd.f32 0.0, %v358
      %v360 = vpop.f32.mrb[0].mxu0
      %v361 = vpop.f32.mrb[0].mxu0
      %v362 = vadd.f32 0.0, %v361
      %v363 = vpop.f32.mrb[0].mxu0
      %364 = vmatprep.mubr.bf16.mxu0 0
      %365 = vmatmul.mubr.bf16.gmra.mrb[0].mxu0 %v219
      %v366 = vpop.f32.mrb[0].mxu0
      %v367 = vadd.f32 0.0, %v366
      %v368 = vpop.f32.mrb[0].mxu0
      %v369 = vpop.f32.mrb[0].mxu0
      %v370 = vadd.f32 0.0, %v369
      %v371 = vpop.f32.mrb[0].mxu0
      %372 = vdwg.mxu0
      %v373 = vpack.c.bf16 %v314, %v311
      %v374 = vpack.c.bf16 %v322, %v319
      %v375 = vpack.c.bf16 %v330, %v327
      %v376 = vpack.c.bf16 %v338, %v335
      %v377 = vpack.c.bf16 %v346, %v343
      %v378 = vpack.c.bf16 %v354, %v351
      %v379 = vpack.c.bf16 %v362, %v359
      %v380 = vpack.c.bf16 %v370, %v367
      %v389 = vunpack.c.l.b16 %v373
      %v390 = vunpack.c.h.b16 %v373
      %v391 = vunpack.c.l.b16 %v374
      %v392 = vunpack.c.h.b16 %v374
      %v393 = vunpack.c.l.b16 %v375
      %v394 = vunpack.c.h.b16 %v375
      %v395 = vunpack.c.l.b16 %v376
      %v396 = vunpack.c.h.b16 %v376
      %v397 = vunpack.c.l.b16 %v377
      %v398 = vunpack.c.h.b16 %v377
      %v399 = vunpack.c.l.b16 %v378
      %v400 = vunpack.c.h.b16 %v378
      %v401 = vunpack.c.l.b16 %v379
      %v402 = vunpack.c.h.b16 %v379
      %v403 = vunpack.c.l.b16 %v380
      %v404 = vunpack.c.h.b16 %v380
      %v405 = vpack.c.b16 %v389, %v389
      %v406 = vpack.c.b16 %v390, %v390
      %v407 = vpack.c.b16 %v391, %v391
      %v408 = vpack.c.b16 %v392, %v392
      %v409 = vpack.c.b16 %v393, %v393
      %v410 = vpack.c.b16 %v394, %v394
      %v411 = vpack.c.b16 %v395, %v395
      %v412 = vpack.c.b16 %v396, %v396
      %v413 = vpack.c.b16 %v397, %v397
      %v414 = vpack.c.b16 %v398, %v398
      %v415 = vpack.c.b16 %v399, %v399
      %v416 = vpack.c.b16 %v400, %v400
      %v417 = vpack.c.b16 %v401, %v401
      %v418 = vpack.c.b16 %v402, %v402
      %v419 = vpack.c.b16 %v403, %v403
      %v420 = vpack.c.b16 %v404, %v404
      %vm437 = vcmask 519168
      %438 = vst.msk [vmem:[%s145] sm:$0xf] %vm437, %v405
      %439 = vst.msk [vmem:[%s145 + $0x4] sm:$0xf] %vm437, %v406
      %440 = vst.msk [vmem:[%s145 + $0x8] sm:$0xf] %vm437, %v407
      %441 = vst.msk [vmem:[%s145 + $0xc] sm:$0xf] %vm437, %v408
      %442 = vst.msk [vmem:[%s145 + $0x10] sm:$0xf] %vm437, %v409
      %443 = vst.msk [vmem:[%s145 + $0x14] sm:$0xf] %vm437, %v410
      %444 = vst.msk [vmem:[%s145 + $0x18] sm:$0xf] %vm437, %v411
      %445 = vst.msk [vmem:[%s145 + $0x1c] sm:$0xf] %vm437, %v412
      %446 = vst.msk [vmem:[%s145 + $0x20] sm:$0xf] %vm437, %v413
      %447 = vst.msk [vmem:[%s145 + $0x24] sm:$0xf] %vm437, %v414
      %448 = vst.msk [vmem:[%s145 + $0x28] sm:$0xf] %vm437, %v415
      %449 = vst.msk [vmem:[%s145 + $0x2c] sm:$0xf] %vm437, %v416
      %450 = vst.msk [vmem:[%s145 + $0x30] sm:$0xf] %vm437, %v417
      %451 = vst.msk [vmem:[%s145 + $0x34] sm:$0xf] %vm437, %v418
      %452 = vst.msk [vmem:[%s145 + $0x38] sm:$0xf] %vm437, %v419
      %453 = vst.msk [vmem:[%s145 + $0x3c] sm:$0xf] %vm437, %v420
      %s454 = smul.u32 16, %s13
      %p455 = scmp.lt.s32.totalorder %s454, 63
      %s456 = scalar_select %p455, %s454, 63
      %s457 = smul.addr %s456, 4
      %s458 = scalar_lea.vmem %s2, %s457
      // Predicated region
      $region29: #{graphsage_forward.3} parent=27 // pred_check
        %p459 = pneg %p78
      $region30: #{graphsage_forward.3} parent=27 // pred_check_branch
        %461 = sbr.rel (%p459) target = $region32
      $region31: #{graphsage_forward.3} parent=27 // pred_region
        %s462 = smul.u32 16, %s13
      $region32: #{graphsage_forward.3} parent=27 // pred_fallthru
        _
    $region28: #{graphsage_forward.3} parent=5 // pred_fallthru
      _
    %p463 = scmp.le.s32.totalorder 2, %s8
    // Predicated region
    $region33: #{graphsage_forward.3} parent=5 // pred_check
      %p464 = pneg %p463
    $region34: #{graphsage_forward.3} parent=5 // pred_check_branch
      %466 = sbr.rel (%p464) target = $region36
    $region35: #{graphsage_forward.3} parent=5 // pred_region
      %s467 = ssub.s32 %s8, 2
      // Predicated region
      $region37: #{graphsage_forward.3} parent=35 // pred_check
        %p468 = pneg %p84
      $region38: #{graphsage_forward.3} parent=35 // pred_check_branch
        %470 = sbr.rel (%p468) target = $region40
      $region39: #{graphsage_forward.3} parent=35 // pred_region
        %s471 = smul.u32 16, %s14
        %p472 = scmp.lt.s32.totalorder %s471, 63
        %s473 = scalar_select %p472, %s471, 63
        %s474 = smul.addr %s473, 4
        %s475 = scalar_lea.vmem %s2, %s474
      $region40: #{graphsage_forward.3} parent=35 // pred_fallthru
        _
    $region36: #{graphsage_forward.3} parent=5 // pred_fallthru
      _
  $region6: #{graphsage_forward.3} parent=0 // loop_footer
    %s12 = sadd.s32 1, %s8
  $region7: #{graphsage_forward.3} parent=0 // loop_footer_branch
    %7 = sbr.rel target = $region3
  $region8: #{graphsage_forward.3} parent=0 // loop_exit
    _

// kernel: graphsage_forward.4
$region0: #{graphsage_forward.4}
  #allocation0 [shape = 'u32[]', space=smem, size = 0x4, offset = 0x4, fixed_abs, tag = 'smem constant byte address 0x4 - core index']
  #allocation1 [shape = 'u32[144,128]{1,0:T(1,128)}', space=vmem, size = 0x12000, scoped, tag = 'internal scratch']
  %s0 = inlined_call_operand.vmem [shape: bf16[512,512], index: 0, kind: input, shape index: {}]
  %s1 = inlined_call_operand.vmem [shape: bf16[512,64], index: 1, kind: input, shape index: {}]
  %s2 = inlined_call_operand.vmem [shape: bf16[64,64], index: 2, kind: input, shape index: {}]
  %s3 = inlined_call_operand.vmem [shape: bf16[512,64], index: 3, kind: output, shape index: {}]
  %s4 = sld [smem:[#allocation0]]
  $region45: #{graphsage_forward.4} parent=0
    _
  %s6 = ssub.s32 1, %s4
  %s7 = scalar_select 0, %s6, %s4
  loop: start=0, step=1, limit=6
  $region2: #{graphsage_forward.4} parent=0 // loop_pre_header
    _
  $region3: #{graphsage_forward.4} parent=0 // loop_header
    %s9 = sphi 0, %s13
    %p10 = scmp.ge.s32.totalorder %s9, 6
    %s19 = sphi 0, %s21
    %s22 = sphi 0, %s19
    %s23 = sphi 0, %s22
    %s39 = sphi 0, %s23
    %s43 = sphi 0, %s43
    %s45 = sphi 0, %s43
    %s46 = sphi 0, %s45
    %s60 = sphi 0, %s46
    %s64 = sphi 0, %s64
    %s66 = sphi 0, %s64
    %s67 = sphi 0, %s66
    %s81 = sphi 0, %s67
    %s87 = sphi 0, %s89
    %s90 = sphi 0, %s87
    %s91 = sphi 0, %s90
    %s107 = sphi 0, %s91
  $region4: #{graphsage_forward.4} parent=0 // loop_header_branch
    %12 = sbr.rel (%p10) target = $region8
  $region5: #{graphsage_forward.4} parent=0 // loop_body
    %s14 = ssub.s32 %s9, 1
    %s15 = ssub.s32 %s9, 2
    %s16 = sadd.s32 %s9, 1
    %s17 = ssub.s32 %s9, %s16
    %p18 = scmp.eq.s32.totalorder %s17, 0
    %s20 = sadd.s32 %s19, 1
    %s21 = scalar_select %p18, %s19, %s20
    %p24 = pneg %p18
    %p25 = scmp.eq.s32.totalorder %s9, 3
    %p26 = por %p24, %p25
    %p27 = scmp.ne.s32.totalorder %s19, %s22
    %p28 = scmp.eq.s32.totalorder %s9, 0
    %p29 = por %p27, %p28
    %p30 = scmp.ne.s32.totalorder %s19, %s22
    %p31 = scmp.eq.s32.totalorder %s14, 3
    %p32 = por %p30, %p31
    %p33 = scmp.ne.s32.totalorder %s22, %s23
    %p34 = scmp.eq.s32.totalorder %s14, 0
    %p35 = por %p33, %p34
    %p36 = scmp.ne.s32.totalorder %s22, %s23
    %p37 = scmp.eq.s32.totalorder %s15, 3
    %p38 = por %p36, %p37
    %p40 = scmp.ne.s32.totalorder %s23, %s39
    %p41 = scmp.eq.s32.totalorder %s15, 0
    %p42 = por %p40, %p41
    %s44 = sadd.s32 %s43, 1
    %p47 = scmp.eq.s32.totalorder %s9, 3
    %p48 = scmp.ne.s32.totalorder %s43, %s45
    %p49 = scmp.eq.s32.totalorder %s9, 0
    %p50 = por %p48, %p49
    %p51 = scmp.ne.s32.totalorder %s43, %s45
    %p52 = scmp.eq.s32.totalorder %s14, 3
    %p53 = por %p51, %p52
    %p54 = scmp.ne.s32.totalorder %s45, %s46
    %p55 = scmp.eq.s32.totalorder %s14, 0
    %p56 = por %p54, %p55
    %p57 = scmp.ne.s32.totalorder %s45, %s46
    %p58 = scmp.eq.s32.totalorder %s15, 3
    %p59 = por %p57, %p58
    %p61 = scmp.ne.s32.totalorder %s46, %s60
    %p62 = scmp.eq.s32.totalorder %s15, 0
    %p63 = por %p61, %p62
    %s65 = sadd.s32 %s64, 1
    %p68 = scmp.eq.s32.totalorder %s9, 3
    %p69 = scmp.ne.s32.totalorder %s64, %s66
    %p70 = scmp.eq.s32.totalorder %s9, 0
    %p71 = por %p69, %p70
    %p72 = scmp.ne.s32.totalorder %s64, %s66
    %p73 = scmp.eq.s32.totalorder %s14, 3
    %p74 = por %p72, %p73
    %p75 = scmp.ne.s32.totalorder %s66, %s67
    %p76 = scmp.eq.s32.totalorder %s14, 0
    %p77 = por %p75, %p76
    %p78 = scmp.ne.s32.totalorder %s66, %s67
    %p79 = scmp.eq.s32.totalorder %s15, 3
    %p80 = por %p78, %p79
    %p82 = scmp.ne.s32.totalorder %s67, %s81
    %p83 = scmp.eq.s32.totalorder %s15, 0
    %p84 = por %p82, %p83
    %s85 = ssub.s32 %s9, %s16
    %p86 = scmp.eq.s32.totalorder %s85, 0
    %s88 = sadd.s32 %s87, 1
    %s89 = scalar_select %p86, %s87, %s88
    %p92 = pneg %p86
    %p93 = scmp.eq.s32.totalorder %s9, 3
    %p94 = por %p92, %p93
    %p95 = scmp.ne.s32.totalorder %s87, %s90
    %p96 = scmp.eq.s32.totalorder %s9, 0
    %p97 = por %p95, %p96
    %p98 = scmp.ne.s32.totalorder %s87, %s90
    %p99 = scmp.eq.s32.totalorder %s14, 3
    %p100 = por %p98, %p99
    %p101 = scmp.ne.s32.totalorder %s90, %s91
    %p102 = scmp.eq.s32.totalorder %s14, 0
    %p103 = por %p101, %p102
    %p104 = scmp.ne.s32.totalorder %s90, %s91
    %p105 = scmp.eq.s32.totalorder %s15, 3
    %p106 = por %p104, %p105
    %p108 = scmp.ne.s32.totalorder %s91, %s107
    %p109 = scmp.eq.s32.totalorder %s15, 0
    %p110 = por %p108, %p109
    %p111 = scmp.le.s32.totalorder 1, %s9
    %p112 = scmp.lt.s32.totalorder %s9, 5
    %p113 = pnand %p111, %p112
    %p114 = pneg %p113
    // Predicated region
    $region9: #{graphsage_forward.4} parent=5 // pred_check
      _
    $region10: #{graphsage_forward.4} parent=5 // pred_check_branch
      %116 = sbr.rel (%p113) target = $region12
    $region11: #{graphsage_forward.4} parent=5 // pred_region
      %s117 = ssub.s32 %s9, 1
      // Predicated region
      $region13: #{graphsage_forward.4} parent=11 // pred_check
        %p118 = pneg %p56
      $region14: #{graphsage_forward.4} parent=11 // pred_check_branch
        %120 = sbr.rel (%p118) target = $region16
      $region15: #{graphsage_forward.4} parent=11 // pred_region
        _
      $region16: #{graphsage_forward.4} parent=11 // pred_fallthru
        _
      // Predicated region
      $region17: #{graphsage_forward.4} parent=11 // pred_check
        %p121 = pneg %p77
      $region18: #{graphsage_forward.4} parent=11 // pred_check_branch
        %123 = sbr.rel (%p121) target = $region20
      $region19: #{graphsage_forward.4} parent=11 // pred_region
        _
      $region20: #{graphsage_forward.4} parent=11 // pred_fallthru
        _
    $region12: #{graphsage_forward.4} parent=5 // pred_fallthru
      _
    %p124 = scmp.lt.s32.totalorder %s9, 4
    // Predicated region
    $region21: #{graphsage_forward.4} parent=5 // pred_check
      %p125 = pneg %p124
    $region22: #{graphsage_forward.4} parent=5 // pred_check_branch
      %127 = sbr.rel (%p125) target = $region24
    $region23: #{graphsage_forward.4} parent=5 // pred_region
      // Predicated region
      $region25: #{graphsage_forward.4} parent=23 // pred_check
        %p128 = pneg %p29
      $region26: #{graphsage_forward.4} parent=23 // pred_check_branch
        %130 = sbr.rel (%p128) target = $region28
      $region27: #{graphsage_forward.4} parent=23 // pred_region
        %s131 = smul.u32 16, %s9
        %p132 = scmp.lt.s32.totalorder %s131, 63
        %s133 = scalar_select %p132, %s131, 63
        %s134 = smul.addr %s133, 4
        %s135 = smul.addr %s134, 4
        %s136 = scalar_lea.vmem %s0, %s135
        %s137 = smul.u32 16, %s9
      $region28: #{graphsage_forward.4} parent=23 // pred_fallthru
        _
    $region24: #{graphsage_forward.4} parent=5 // pred_fallthru
      _
    %p138 = scmp.le.s32.totalorder 1, %s9
    %p139 = scmp.lt.s32.totalorder %s9, 5
    %p140 = pnand %p138, %p139
    %p141 = pneg %p140
    // Predicated region
    $region29: #{graphsage_forward.4} parent=5 // pred_check
      _
    $region30: #{graphsage_forward.4} parent=5 // pred_check_branch
      %143 = sbr.rel (%p140) target = $region32
    $region31: #{graphsage_forward.4} parent=5 // pred_region
      %s144 = ssub.s32 %s9, 1
      %s145 = smul.u32 16, %s14
      %p146 = scmp.lt.s32.totalorder %s145, 63
      %s147 = scalar_select %p146, %s145, 63
      %s148 = smul.addr %s147, 4
      %s149 = smul.addr %s148, 4
      %s150 = scalar_lea.vmem %s0, %s149
      %p151 = pneg %p35
      %p152 = pneg %p32
      %p153 = pneg %p56
      %p154 = pneg %p53
      %p155 = pneg %p77
      %p156 = pneg %p74
      %p157 = pneg %p103
      %p158 = pneg %p100
      %s159 = smul.u32 16, %s14
      %p160 = scmp.lt.s32.totalorder %s159, 63
      %s161 = scalar_select %p160, %s159, 63
      %s162 = smul.addr %s161, 4
      %s163 = scalar_lea.vmem %s3, %s162
      %s164 = smul.u32 16, %s14
      %p165 = scmp.lt.s32.totalorder %s164, 63
      %s166 = scalar_select %p165, %s164, 63
      %s167 = smul.addr %s166, 4
      %s168 = smul.addr %s167, 4
      %s169 = scalar_lea.vmem %s0, %s168
      %s170 = smul.u32 16, %s14
      %s171 = smul.u32 16, %s14
      %p172 = scmp.lt.s32.totalorder %s171, 63
      %s173 = scalar_select %p172, %s171, 63
      %s174 = smul.addr %s173, 4
      %s175 = scalar_lea.vmem %s3, %s174
      %s176 = smul.u32 16, %s14
      %v178 = vld [vmem:[%s169] sm:$0xff]
      %v179 = vld [vmem:[%s169 + $0x8] sm:$0xff]
      %v180 = vld [vmem:[%s169 + $0x10] sm:$0xff]
      %v181 = vld [vmem:[%s169 + $0x18] sm:$0xff]
      %v182 = vld [vmem:[%s169 + $0x20] sm:$0xff]
      %v183 = vld [vmem:[%s169 + $0x28] sm:$0xff]
      %v184 = vld [vmem:[%s169 + $0x30] sm:$0xff]
      %v185 = vld [vmem:[%s169 + $0x38] sm:$0xff]
      %v186 = vld [vmem:[%s169 + $0x40] sm:$0xff]
      %v187 = vld [vmem:[%s169 + $0x48] sm:$0xff]
      %v188 = vld [vmem:[%s169 + $0x50] sm:$0xff]
      %v189 = vld [vmem:[%s169 + $0x58] sm:$0xff]
      %v190 = vld [vmem:[%s169 + $0x60] sm:$0xff]
      %v191 = vld [vmem:[%s169 + $0x68] sm:$0xff]
      %v192 = vld [vmem:[%s169 + $0x70] sm:$0xff]
      %v193 = vld [vmem:[%s169 + $0x78] sm:$0xff]
      %v194 = vld [vmem:[%s169 + $0x80] sm:$0xff]
      %v195 = vld [vmem:[%s169 + $0x88] sm:$0xff]
      %v196 = vld [vmem:[%s169 + $0x90] sm:$0xff]
      %v197 = vld [vmem:[%s169 + $0x98] sm:$0xff]
      %v198 = vld [vmem:[%s169 + $0xa0] sm:$0xff]
      %v199 = vld [vmem:[%s169 + $0xa8] sm:$0xff]
      %v200 = vld [vmem:[%s169 + $0xb0] sm:$0xff]
      %v201 = vld [vmem:[%s169 + $0xb8] sm:$0xff]
      %v202 = vld [vmem:[%s169 + $0xc0] sm:$0xff]
      %v203 = vld [vmem:[%s169 + $0xc8] sm:$0xff]
      %v204 = vld [vmem:[%s169 + $0xd0] sm:$0xff]
      %v205 = vld [vmem:[%s169 + $0xd8] sm:$0xff]
      %v206 = vld [vmem:[%s169 + $0xe0] sm:$0xff]
      %v207 = vld [vmem:[%s169 + $0xe8] sm:$0xff]
      %v208 = vld [vmem:[%s169 + $0xf0] sm:$0xff]
      %v209 = vld [vmem:[%s169 + $0xf8] sm:$0xff]
      %v210 = vld [vmem:[%s1] sm:$0xf]
      %v211 = vld [vmem:[%s1 + $0x4] sm:$0xf]
      %v212 = vld [vmem:[%s1 + $0x8] sm:$0xf]
      %v213 = vld [vmem:[%s1 + $0xc] sm:$0xf]
      %v214 = vld [vmem:[%s1 + $0x10] sm:$0xf]
      %v215 = vld [vmem:[%s1 + $0x14] sm:$0xf]
      %v216 = vld [vmem:[%s1 + $0x18] sm:$0xf]
      %v217 = vld [vmem:[%s1 + $0x1c] sm:$0xf]
      %v218 = vld [vmem:[%s1 + $0x20] sm:$0xf]
      %v219 = vld [vmem:[%s1 + $0x24] sm:$0xf]
      %v220 = vld [vmem:[%s1 + $0x28] sm:$0xf]
      %v221 = vld [vmem:[%s1 + $0x2c] sm:$0xf]
      %v222 = vld [vmem:[%s1 + $0x30] sm:$0xf]
      %v223 = vld [vmem:[%s1 + $0x34] sm:$0xf]
      %v224 = vld [vmem:[%s1 + $0x38] sm:$0xf]
      %v225 = vld [vmem:[%s1 + $0x3c] sm:$0xf]
      %v226 = vld [vmem:[%s1 + $0x40] sm:$0xf]
      %v227 = vld [vmem:[%s1 + $0x44] sm:$0xf]
      %v228 = vld [vmem:[%s1 + $0x48] sm:$0xf]
      %v229 = vld [vmem:[%s1 + $0x4c] sm:$0xf]
      %v230 = vld [vmem:[%s1 + $0x50] sm:$0xf]
      %v231 = vld [vmem:[%s1 + $0x54] sm:$0xf]
      %v232 = vld [vmem:[%s1 + $0x58] sm:$0xf]
      %v233 = vld [vmem:[%s1 + $0x5c] sm:$0xf]
      %v234 = vld [vmem:[%s1 + $0x60] sm:$0xf]
      %v235 = vld [vmem:[%s1 + $0x64] sm:$0xf]
      %v236 = vld [vmem:[%s1 + $0x68] sm:$0xf]
      %v237 = vld [vmem:[%s1 + $0x6c] sm:$0xf]
      %v238 = vld [vmem:[%s1 + $0x70] sm:$0xf]
      %v239 = vld [vmem:[%s1 + $0x74] sm:$0xf]
      %v240 = vld [vmem:[%s1 + $0x78] sm:$0xf]
      %v241 = vld [vmem:[%s1 + $0x7c] sm:$0xf]
      %v242 = vld [vmem:[%s1 + $0x80] sm:$0xf]
      %v243 = vld [vmem:[%s1 + $0x84] sm:$0xf]
      %v244 = vld [vmem:[%s1 + $0x88] sm:$0xf]
      %v245 = vld [vmem:[%s1 + $0x8c] sm:$0xf]
      %v246 = vld [vmem:[%s1 + $0x90] sm:$0xf]
      %v247 = vld [vmem:[%s1 + $0x94] sm:$0xf]
      %v248 = vld [vmem:[%s1 + $0x98] sm:$0xf]
      %v249 = vld [vmem:[%s1 + $0x9c] sm:$0xf]
      %v250 = vld [vmem:[%s1 + $0xa0] sm:$0xf]
      %v251 = vld [vmem:[%s1 + $0xa4] sm:$0xf]
      %v252 = vld [vmem:[%s1 + $0xa8] sm:$0xf]
      %v253 = vld [vmem:[%s1 + $0xac] sm:$0xf]
      %v254 = vld [vmem:[%s1 + $0xb0] sm:$0xf]
      %v255 = vld [vmem:[%s1 + $0xb4] sm:$0xf]
      %v256 = vld [vmem:[%s1 + $0xb8] sm:$0xf]
      %v257 = vld [vmem:[%s1 + $0xbc] sm:$0xf]
      %v258 = vld [vmem:[%s1 + $0xc0] sm:$0xf]
      %v259 = vld [vmem:[%s1 + $0xc4] sm:$0xf]
      %v260 = vld [vmem:[%s1 + $0xc8] sm:$0xf]
      %v261 = vld [vmem:[%s1 + $0xcc] sm:$0xf]
      %v262 = vld [vmem:[%s1 + $0xd0] sm:$0xf]
      %v263 = vld [vmem:[%s1 + $0xd4] sm:$0xf]
      %v264 = vld [vmem:[%s1 + $0xd8] sm:$0xf]
      %v265 = vld [vmem:[%s1 + $0xdc] sm:$0xf]
      %v266 = vld [vmem:[%s1 + $0xe0] sm:$0xf]
      %v267 = vld [vmem:[%s1 + $0xe4] sm:$0xf]
      %v268 = vld [vmem:[%s1 + $0xe8] sm:$0xf]
      %v269 = vld [vmem:[%s1 + $0xec] sm:$0xf]
      %v270 = vld [vmem:[%s1 + $0xf0] sm:$0xf]
      %v271 = vld [vmem:[%s1 + $0xf4] sm:$0xf]
      %v272 = vld [vmem:[%s1 + $0xf8] sm:$0xf]
      %v273 = vld [vmem:[%s1 + $0xfc] sm:$0xf]
      %v306 = vunpack.c.l.b16 %v178
      %v307 = vunpack.c.h.b16 %v178
      %v308 = vunpack.c.l.b16 %v179
      %v309 = vunpack.c.h.b16 %v179
      %v310 = vunpack.c.l.b16 %v180
      %v311 = vunpack.c.h.b16 %v180
      %v312 = vunpack.c.l.b16 %v181
      %v313 = vunpack.c.h.b16 %v181
      %v314 = vunpack.c.l.b16 %v182
      %v315 = vunpack.c.h.b16 %v182
      %v316 = vunpack.c.l.b16 %v183
      %v317 = vunpack.c.h.b16 %v183
      %v318 = vunpack.c.l.b16 %v184
      %v319 = vunpack.c.h.b16 %v184
      %v320 = vunpack.c.l.b16 %v185
      %v321 = vunpack.c.h.b16 %v185
      %v322 = vunpack.c.l.b16 %v186
      %v323 = vunpack.c.h.b16 %v186
      %v324 = vunpack.c.l.b16 %v187
      %v325 = vunpack.c.h.b16 %v187
      %v326 = vunpack.c.l.b16 %v188
      %v327 = vunpack.c.h.b16 %v188
      %v328 = vunpack.c.l.b16 %v189
      %v329 = vunpack.c.h.b16 %v189
      %v330 = vunpack.c.l.b16 %v190
      %v331 = vunpack.c.h.b16 %v190
      %v332 = vunpack.c.l.b16 %v191
      %v333 = vunpack.c.h.b16 %v191
      %v334 = vunpack.c.l.b16 %v192
      %v335 = vunpack.c.h.b16 %v192
      %v336 = vunpack.c.l.b16 %v193
      %v337 = vunpack.c.h.b16 %v193
      %v338 = vunpack.c.l.b16 %v194
      %v339 = vunpack.c.h.b16 %v194
      %v340 = vunpack.c.l.b16 %v195
      %v341 = vunpack.c.h.b16 %v195
      %v342 = vunpack.c.l.b16 %v196
      %v343 = vunpack.c.h.b16 %v196
      %v344 = vunpack.c.l.b16 %v197
      %v345 = vunpack.c.h.b16 %v197
      %v346 = vunpack.c.l.b16 %v198
      %v347 = vunpack.c.h.b16 %v198
      %v348 = vunpack.c.l.b16 %v199
      %v349 = vunpack.c.h.b16 %v199
      %v350 = vunpack.c.l.b16 %v200
      %v351 = vunpack.c.h.b16 %v200
      %v352 = vunpack.c.l.b16 %v201
      %v353 = vunpack.c.h.b16 %v201
      %v354 = vunpack.c.l.b16 %v202
      %v355 = vunpack.c.h.b16 %v202
      %v356 = vunpack.c.l.b16 %v203
      %v357 = vunpack.c.h.b16 %v203
      %v358 = vunpack.c.l.b16 %v204
      %v359 = vunpack.c.h.b16 %v204
      %v360 = vunpack.c.l.b16 %v205
      %v361 = vunpack.c.h.b16 %v205
      %v362 = vunpack.c.l.b16 %v206
      %v363 = vunpack.c.h.b16 %v206
      %v364 = vunpack.c.l.b16 %v207
      %v365 = vunpack.c.h.b16 %v207
      %v366 = vunpack.c.l.b16 %v208
      %v367 = vunpack.c.h.b16 %v208
      %v368 = vunpack.c.l.b16 %v209
      %v369 = vunpack.c.h.b16 %v209
      %v370 = vpack.c.b16 %v310, %v306
      %v371 = vpack.c.b16 %v311, %v307
      %v372 = vpack.c.b16 %v312, %v308
      %v373 = vpack.c.b16 %v313, %v309
      %v374 = vpack.c.b16 %v318, %v314
      %v375 = vpack.c.b16 %v319, %v315
      %v376 = vpack.c.b16 %v320, %v316
      %v377 = vpack.c.b16 %v321, %v317
      %v378 = vpack.c.b16 %v326, %v322
      %v379 = vpack.c.b16 %v327, %v323
      %v380 = vpack.c.b16 %v328, %v324
      %v381 = vpack.c.b16 %v329, %v325
      %v382 = vpack.c.b16 %v334, %v330
      %v383 = vpack.c.b16 %v335, %v331
      %v384 = vpack.c.b16 %v336, %v332
      %v385 = vpack.c.b16 %v337, %v333
      %v386 = vpack.c.b16 %v342, %v338
      %v387 = vpack.c.b16 %v343, %v339
      %v388 = vpack.c.b16 %v344, %v340
      %v389 = vpack.c.b16 %v345, %v341
      %v390 = vpack.c.b16 %v350, %v346
      %v391 = vpack.c.b16 %v351, %v347
      %v392 = vpack.c.b16 %v352, %v348
      %v393 = vpack.c.b16 %v353, %v349
      %v394 = vpack.c.b16 %v358, %v354
      %v395 = vpack.c.b16 %v359, %v355
      %v396 = vpack.c.b16 %v360, %v356
      %v397 = vpack.c.b16 %v361, %v357
      %v398 = vpack.c.b16 %v366, %v362
      %v399 = vpack.c.b16 %v367, %v363
      %v400 = vpack.c.b16 %v368, %v364
      %v401 = vpack.c.b16 %v369, %v365
      %v498 = vunpack.c.l.b16 %v210
      %v499 = vunpack.c.l.b16 %v211
      %v500 = vunpack.c.l.b16 %v212
      %v501 = vunpack.c.l.b16 %v213
      %v502 = vunpack.c.l.b16 %v214
      %v503 = vunpack.c.l.b16 %v215
      %v504 = vunpack.c.l.b16 %v216
      %v505 = vunpack.c.l.b16 %v217
      %v506 = vunpack.c.l.b16 %v218
      %v507 = vunpack.c.l.b16 %v219
      %v508 = vunpack.c.l.b16 %v220
      %v509 = vunpack.c.l.b16 %v221
      %v510 = vunpack.c.l.b16 %v222
      %v511 = vunpack.c.l.b16 %v223
      %v512 = vunpack.c.l.b16 %v224
      %v513 = vunpack.c.l.b16 %v225
      %v514 = vunpack.c.l.b16 %v226
      %v515 = vunpack.c.l.b16 %v227
      %v516 = vunpack.c.l.b16 %v228
      %v517 = vunpack.c.l.b16 %v229
      %v518 = vunpack.c.l.b16 %v230
      %v519 = vunpack.c.l.b16 %v231
      %v520 = vunpack.c.l.b16 %v232
      %v521 = vunpack.c.l.b16 %v233
      %v522 = vunpack.c.l.b16 %v234
      %v523 = vunpack.c.l.b16 %v235
      %v524 = vunpack.c.l.b16 %v236
      %v525 = vunpack.c.l.b16 %v237
      %v526 = vunpack.c.l.b16 %v238
      %v527 = vunpack.c.l.b16 %v239
      %v528 = vunpack.c.l.b16 %v240
      %v529 = vunpack.c.l.b16 %v241
      %v530 = vunpack.c.l.b16 %v242
      %v531 = vunpack.c.l.b16 %v243
      %v532 = vunpack.c.l.b16 %v244
      %v533 = vunpack.c.l.b16 %v245
      %v534 = vunpack.c.l.b16 %v246
      %v535 = vunpack.c.l.b16 %v247
      %v536 = vunpack.c.l.b16 %v248
      %v537 = vunpack.c.l.b16 %v249
      %v538 = vunpack.c.l.b16 %v250
      %v539 = vunpack.c.l.b16 %v251
      %v540 = vunpack.c.l.b16 %v252
      %v541 = vunpack.c.l.b16 %v253
      %v542 = vunpack.c.l.b16 %v254
      %v543 = vunpack.c.l.b16 %v255
      %v544 = vunpack.c.l.b16 %v256
      %v545 = vunpack.c.l.b16 %v257
      %v546 = vunpack.c.l.b16 %v258
      %v547 = vunpack.c.l.b16 %v259
      %v548 = vunpack.c.l.b16 %v260
      %v549 = vunpack.c.l.b16 %v261
      %v550 = vunpack.c.l.b16 %v262
      %v551 = vunpack.c.l.b16 %v263
      %v552 = vunpack.c.l.b16 %v264
      %v553 = vunpack.c.l.b16 %v265
      %v554 = vunpack.c.l.b16 %v266
      %v555 = vunpack.c.l.b16 %v267
      %v556 = vunpack.c.l.b16 %v268
      %v557 = vunpack.c.l.b16 %v269
      %v558 = vunpack.c.l.b16 %v270
      %v559 = vunpack.c.l.b16 %v271
      %v560 = vunpack.c.l.b16 %v272
      %v561 = vunpack.c.l.b16 %v273
      %v562 = vpack.c.b16 %v499, %v498
      %v563 = vpack.c.b16 %v501, %v500
      %v564 = vpack.c.b16 %v503, %v502
      %v565 = vpack.c.b16 %v505, %v504
      %v566 = vpack.c.b16 %v507, %v506
      %v567 = vpack.c.b16 %v509, %v508
      %v568 = vpack.c.b16 %v511, %v510
      %v569 = vpack.c.b16 %v513, %v512
      %v570 = vpack.c.b16 %v515, %v514
      %v571 = vpack.c.b16 %v517, %v516
      %v572 = vpack.c.b16 %v519, %v518
      %v573 = vpack.c.b16 %v521, %v520
      %v574 = vpack.c.b16 %v523, %v522
      %v575 = vpack.c.b16 %v525, %v524
      %v576 = vpack.c.b16 %v527, %v526
      %v577 = vpack.c.b16 %v529, %v528
      %v578 = vpack.c.b16 %v531, %v530
      %v579 = vpack.c.b16 %v533, %v532
      %v580 = vpack.c.b16 %v535, %v534
      %v581 = vpack.c.b16 %v537, %v536
      %v582 = vpack.c.b16 %v539, %v538
      %v583 = vpack.c.b16 %v541, %v540
      %v584 = vpack.c.b16 %v543, %v542
      %v585 = vpack.c.b16 %v545, %v544
      %v586 = vpack.c.b16 %v547, %v546
      %v587 = vpack.c.b16 %v549, %v548
      %v588 = vpack.c.b16 %v551, %v550
      %v589 = vpack.c.b16 %v553, %v552
      %v590 = vpack.c.b16 %v555, %v554
      %v591 = vpack.c.b16 %v557, %v556
      %v592 = vpack.c.b16 %v559, %v558
      %v593 = vpack.c.b16 %v561, %v560
      %626 = vmatprep.subr.bf16.mxu0 0
      %627 = vmatpush1.bf16.msra.mxu0 %v562
      %628 = vmatprep.subr.bf16.mxu0 0
      %629 = vmatpush1.bf16.msra.mxu0 %v563
      %630 = vmatprep.subr.bf16.mxu0 0
      %631 = vmatpush1.bf16.msra.mxu0 %v564
      %632 = vmatprep.subr.bf16.mxu0 0
      %633 = vmatpush1.bf16.msra.mxu0 %v565
      %634 = vmatprep.subr.bf16.mxu0 0
      %635 = vmatpush1.bf16.msra.mxu0 %v566
      %636 = vmatprep.subr.bf16.mxu0 0
      %637 = vmatpush1.bf16.msra.mxu0 %v567
      %638 = vmatprep.subr.bf16.mxu0 0
      %639 = vmatpush1.bf16.msra.mxu0 %v568
      %640 = vmatprep.subr.bf16.mxu0 0
      %641 = vmatpush1.bf16.msra.mxu0 %v569
      %642 = vmatprep.subr.bf16.mxu0 0
      %643 = vmatpush1.bf16.msra.mxu0 %v570
      %644 = vmatprep.subr.bf16.mxu0 0
      %645 = vmatpush1.bf16.msra.mxu0 %v571
      %646 = vmatprep.subr.bf16.mxu0 0
      %647 = vmatpush1.bf16.msra.mxu0 %v572
      %648 = vmatprep.subr.bf16.mxu0 0
      %649 = vmatpush1.bf16.msra.mxu0 %v573
      %650 = vmatprep.subr.bf16.mxu0 0
      %651 = vmatpush1.bf16.msra.mxu0 %v574
      %652 = vmatprep.subr.bf16.mxu0 0
      %653 = vmatpush1.bf16.msra.mxu0 %v575
      %654 = vmatprep.subr.bf16.mxu0 0
      %655 = vmatpush1.bf16.msra.mxu0 %v576
      %656 = vmatprep.subr.bf16.mxu0 0
      %657 = vmatpush1.bf16.msra.mxu0 %v577
      %658 = vmatprep.mubr.bf16.mxu0 %v371
      %659 = vmatmul.mubr.bf16.gmra.mrb[0].mxu0 %v370
      %v660 = vpop.f32.mrb[0].mxu0
      %v661 = vadd.f32 0.0, %v660
      %v662 = vpop.f32.mrb[0].mxu0
      %v663 = vpop.f32.mrb[0].mxu0
      %v664 = vadd.f32 0.0, %v663
      %v665 = vpop.f32.mrb[0].mxu0
      %666 = vmatprep.mubr.bf16.mxu0 %v375
      %667 = vmatmul.mubr.bf16.gmra.mrb[0].mxu0 %v374
      %v668 = vpop.f32.mrb[0].mxu0
      %v669 = vadd.f32 0.0, %v668
      %v670 = vpop.f32.mrb[0].mxu0
      %v671 = vpop.f32.mrb[0].mxu0
      %v672 = vadd.f32 0.0, %v671
      %v673 = vpop.f32.mrb[0].mxu0
      %674 = vmatprep.mubr.bf16.mxu0 %v379
      %675 = vmatmul.mubr.bf16.gmra.mrb[0].mxu0 %v378
      %v676 = vpop.f32.mrb[0].mxu0
      %v677 = vadd.f32 0.0, %v676
      %v678 = vpop.f32.mrb[0].mxu0
      %v679 = vpop.f32.mrb[0].mxu0
      %v680 = vadd.f32 0.0, %v679
      %v681 = vpop.f32.mrb[0].mxu0
      %682 = vmatprep.mubr.bf16.mxu0 %v383
      %683 = vmatmul.mubr.bf16.gmra.mrb[0].mxu0 %v382
      %v684 = vpop.f32.mrb[0].mxu0
      %v685 = vadd.f32 0.0, %v684
      %v686 = vpop.f32.mrb[0].mxu0
      %v687 = vpop.f32.mrb[0].mxu0
      %v688 = vadd.f32 0.0, %v687
      %v689 = vpop.f32.mrb[0].mxu0
      %690 = vmatprep.mubr.bf16.mxu0 %v387
      %691 = vmatmul.mubr.bf16.gmra.mrb[0].mxu0 %v386
      %v692 = vpop.f32.mrb[0].mxu0
      %v693 = vadd.f32 0.0, %v692
      %v694 = vpop.f32.mrb[0].mxu0
      %v695 = vpop.f32.mrb[0].mxu0
      %v696 = vadd.f32 0.0, %v695
      %v697 = vpop.f32.mrb[0].mxu0
      %698 = vmatprep.mubr.bf16.mxu0 %v391
      %699 = vmatmul.mubr.bf16.gmra.mrb[0].mxu0 %v390
      %v700 = vpop.f32.mrb[0].mxu0
      %v701 = vadd.f32 0.0, %v700
      %v702 = vpop.f32.mrb[0].mxu0
      %v703 = vpop.f32.mrb[0].mxu0
      %v704 = vadd.f32 0.0, %v703
      %v705 = vpop.f32.mrb[0].mxu0
      %706 = vmatprep.mubr.bf16.mxu0 %v395
      %707 = vmatmul.mubr.bf16.gmra.mrb[0].mxu0 %v394
      %v708 = vpop.f32.mrb[0].mxu0
      %v709 = vadd.f32 0.0, %v708
      %v710 = vpop.f32.mrb[0].mxu0
      %v711 = vpop.f32.mrb[0].mxu0
      %v712 = vadd.f32 0.0, %v711
      %v713 = vpop.f32.mrb[0].mxu0
      %714 = vmatprep.mubr.bf16.mxu0 %v399
      %715 = vmatmul.mubr.bf16.gmra.mrb[0].mxu0 %v398
      %v716 = vpop.f32.mrb[0].mxu0
      %v717 = vadd.f32 0.0, %v716
      %v718 = vpop.f32.mrb[0].mxu0
      %v719 = vpop.f32.mrb[0].mxu0
      %v720 = vadd.f32 0.0, %v719
      %v721 = vpop.f32.mrb[0].mxu0
      %722 = vdwg.mxu0
      %723 = vmatprep.subr.bf16.mxu0 0
      %724 = vmatpush1.bf16.msra.mxu0 %v578
      %725 = vmatprep.subr.bf16.mxu0 0
      %726 = vmatpush1.bf16.msra.mxu0 %v579
      %727 = vmatprep.subr.bf16.mxu0 0
      %728 = vmatpush1.bf16.msra.mxu0 %v580
      %729 = vmatprep.subr.bf16.mxu0 0
      %730 = vmatpush1.bf16.msra.mxu0 %v581
      %731 = vmatprep.subr.bf16.mxu0 0
      %732 = vmatpush1.bf16.msra.mxu0 %v582
      %733 = vmatprep.subr.bf16.mxu0 0
      %734 = vmatpush1.bf16.msra.mxu0 %v583
      %735 = vmatprep.subr.bf16.mxu0 0
      %736 = vmatpush1.bf16.msra.mxu0 %v584
      %737 = vmatprep.subr.bf16.mxu0 0
      %738 = vmatpush1.bf16.msra.mxu0 %v585
      %739 = vmatprep.subr.bf16.mxu0 0
      %740 = vmatpush1.bf16.msra.mxu0 %v586
      %741 = vmatprep.subr.bf16.mxu0 0
      %742 = vmatpush1.bf16.msra.mxu0 %v587
      %743 = vmatprep.subr.bf16.mxu0 0
      %744 = vmatpush1.bf16.msra.mxu0 %v588
      %745 = vmatprep.subr.bf16.mxu0 0
      %746 = vmatpush1.bf16.msra.mxu0 %v589
      %747 = vmatprep.subr.bf16.mxu0 0
      %748 = vmatpush1.bf16.msra.mxu0 %v590
      %749 = vmatprep.subr.bf16.mxu0 0
      %750 = vmatpush1.bf16.msra.mxu0 %v591
      %751 = vmatprep.subr.bf16.mxu0 0
      %752 = vmatpush1.bf16.msra.mxu0 %v592
      %753 = vmatprep.subr.bf16.mxu0 0
      %754 = vmatpush1.bf16.msra.mxu0 %v593
      %755 = vmatprep.mubr.bf16.mxu0 %v373
      %756 = vmatmul.mubr.bf16.gmra.mrb[0].mxu0 %v372
      %v757 = vpop.f32.mrb[0].mxu0
      %v758 = vadd.f32 %v661, %v757
      %v759 = vpop.f32.mrb[0].mxu0
      %v760 = vpop.f32.mrb[0].mxu0
      %v761 = vadd.f32 %v664, %v760
      %v762 = vpop.f32.mrb[0].mxu0
      %763 = vmatprep.mubr.bf16.mxu0 %v377
      %764 = vmatmul.mubr.bf16.gmra.mrb[0].mxu0 %v376
      %v765 = vpop.f32.mrb[0].mxu0
      %v766 = vadd.f32 %v669, %v765
      %v767 = vpop.f32.mrb[0].mxu0
      %v768 = vpop.f32.mrb[0].mxu0
      %v769 = vadd.f32 %v672, %v768
      %v770 = vpop.f32.mrb[0].mxu0
      %771 = vmatprep.mubr.bf16.mxu0 %v381
      %772 = vmatmul.mubr.bf16.gmra.mrb[0].mxu0 %v380
      %v773 = vpop.f32.mrb[0].mxu0
      %v774 = vadd.f32 %v677, %v773
      %v775 = vpop.f32.mrb[0].mxu0
      %v776 = vpop.f32.mrb[0].mxu0
      %v777 = vadd.f32 %v680, %v776
      %v778 = vpop.f32.mrb[0].mxu0
      %779 = vmatprep.mubr.bf16.mxu0 %v385
      %780 = vmatmul.mubr.bf16.gmra.mrb[0].mxu0 %v384
      %v781 = vpop.f32.mrb[0].mxu0
      %v782 = vadd.f32 %v685, %v781
      %v783 = vpop.f32.mrb[0].mxu0
      %v784 = vpop.f32.mrb[0].mxu0
      %v785 = vadd.f32 %v688, %v784
      %v786 = vpop.f32.mrb[0].mxu0
      %787 = vmatprep.mubr.bf16.mxu0 %v389
      %788 = vmatmul.mubr.bf16.gmra.mrb[0].mxu0 %v388
      %v789 = vpop.f32.mrb[0].mxu0
      %v790 = vadd.f32 %v693, %v789
      %v791 = vpop.f32.mrb[0].mxu0
      %v792 = vpop.f32.mrb[0].mxu0
      %v793 = vadd.f32 %v696, %v792
      %v794 = vpop.f32.mrb[0].mxu0
      %795 = vmatprep.mubr.bf16.mxu0 %v393
      %796 = vmatmul.mubr.bf16.gmra.mrb[0].mxu0 %v392
      %v797 = vpop.f32.mrb[0].mxu0
      %v798 = vadd.f32 %v701, %v797
      %v799 = vpop.f32.mrb[0].mxu0
      %v800 = vpop.f32.mrb[0].mxu0
      %v801 = vadd.f32 %v704, %v800
      %v802 = vpop.f32.mrb[0].mxu0
      %803 = vmatprep.mubr.bf16.mxu0 %v397
      %804 = vmatmul.mubr.bf16.gmra.mrb[0].mxu0 %v396
      %v805 = vpop.f32.mrb[0].mxu0
      %v806 = vadd.f32 %v709, %v805
      %v807 = vpop.f32.mrb[0].mxu0
      %v808 = vpop.f32.mrb[0].mxu0
      %v809 = vadd.f32 %v712, %v808
      %v810 = vpop.f32.mrb[0].mxu0
      %811 = vmatprep.mubr.bf16.mxu0 %v401
      %812 = vmatmul.mubr.bf16.gmra.mrb[0].mxu0 %v400
      %v813 = vpop.f32.mrb[0].mxu0
      %v814 = vadd.f32 %v717, %v813
      %v815 = vpop.f32.mrb[0].mxu0
      %v816 = vpop.f32.mrb[0].mxu0
      %v817 = vadd.f32 %v720, %v816
      %v818 = vpop.f32.mrb[0].mxu0
      %819 = vdwg.mxu0
      %v820 = vmax.f32 %v758, 0.0
      %v821 = vmax.f32 %v761, 0.0
      %v822 = vmax.f32 %v766, 0.0
      %v823 = vmax.f32 %v769, 0.0
      %v824 = vmax.f32 %v774, 0.0
      %v825 = vmax.f32 %v777, 0.0
      %v826 = vmax.f32 %v782, 0.0
      %v827 = vmax.f32 %v785, 0.0
      %v828 = vmax.f32 %v790, 0.0
      %v829 = vmax.f32 %v793, 0.0
      %v830 = vmax.f32 %v798, 0.0
      %v831 = vmax.f32 %v801, 0.0
      %v832 = vmax.f32 %v806, 0.0
      %v833 = vmax.f32 %v809, 0.0
      %v834 = vmax.f32 %v814, 0.0
      %v835 = vmax.f32 %v817, 0.0
      %v836 = vpack.c.bf16 %v821, %v820
      %v837 = vpack.c.bf16 %v823, %v822
      %v838 = vpack.c.bf16 %v825, %v824
      %v839 = vpack.c.bf16 %v827, %v826
      %v840 = vpack.c.bf16 %v829, %v828
      %v841 = vpack.c.bf16 %v831, %v830
      %v842 = vpack.c.bf16 %v833, %v832
      %v843 = vpack.c.bf16 %v835, %v834
      %v844 = vld [vmem:[%s2] sm:$0xf]
      %v845 = vld [vmem:[%s2 + $0x4] sm:$0xf]
      %v846 = vld [vmem:[%s2 + $0x8] sm:$0xf]
      %v847 = vld [vmem:[%s2 + $0xc] sm:$0xf]
      %v848 = vld [vmem:[%s2 + $0x10] sm:$0xf]
      %v849 = vld [vmem:[%s2 + $0x14] sm:$0xf]
      %v850 = vld [vmem:[%s2 + $0x18] sm:$0xf]
      %v851 = vld [vmem:[%s2 + $0x1c] sm:$0xf]
      %v860 = vunpack.c.l.b16 %v844
      %v861 = vunpack.c.l.b16 %v845
      %v862 = vunpack.c.l.b16 %v846
      %v863 = vunpack.c.l.b16 %v847
      %v864 = vunpack.c.l.b16 %v848
      %v865 = vunpack.c.l.b16 %v849
      %v866 = vunpack.c.l.b16 %v850
      %v867 = vunpack.c.l.b16 %v851
      %v868 = vpack.c.b16 %v861, %v860
      %v869 = vpack.c.b16 %v863, %v862
      %v870 = vpack.c.b16 %v865, %v864
      %v871 = vpack.c.b16 %v867, %v866
      %vm876 = vcmask 523264
      %v878 = vsel %vm876, %v836, 0
      %v881 = vsel %vm876, %v837, 0
      %v884 = vsel %vm876, %v838, 0
      %v887 = vsel %vm876, %v839, 0
      %v890 = vsel %vm876, %v840, 0
      %v893 = vsel %vm876, %v841, 0
      %v896 = vsel %vm876, %v842, 0
      %v899 = vsel %vm876, %v843, 0
      %901 = vmatprep.subr.bf16.mxu0 0
      %902 = vmatpush1.bf16.msra.mxu0 %v868
      %903 = vmatprep.subr.bf16.mxu0 0
      %904 = vmatpush1.bf16.msra.mxu0 %v869
      %905 = vmatprep.subr.bf16.mxu0 0
      %906 = vmatpush1.bf16.msra.mxu0 %v870
      %907 = vmatprep.subr.bf16.mxu0 0
      %908 = vmatpush1.bf16.msra.mxu0 %v871
      %909 = vmatprep.subr.bf16.mxu0 0
      %910 = vmatpush1.bf16.msra.mxu0 0
      %911 = vmatprep.subr.bf16.mxu0 0
      %912 = vmatpush1.bf16.msra.mxu0 0
      %913 = vmatprep.subr.bf16.mxu0 0
      %914 = vmatpush1.bf16.msra.mxu0 0
      %915 = vmatprep.subr.bf16.mxu0 0
      %916 = vmatpush1.bf16.msra.mxu0 0
      %917 = vmatprep.subr.bf16.mxu0 0
      %918 = vmatpush1.bf16.msra.mxu0 0
      %919 = vmatprep.subr.bf16.mxu0 0
      %920 = vmatpush1.bf16.msra.mxu0 0
      %921 = vmatprep.subr.bf16.mxu0 0
      %922 = vmatpush1.bf16.msra.mxu0 0
      %923 = vmatprep.subr.bf16.mxu0 0
      %924 = vmatpush1.bf16.msra.mxu0 0
      %925 = vmatprep.subr.bf16.mxu0 0
      %926 = vmatpush1.bf16.msra.mxu0 0
      %927 = vmatprep.subr.bf16.mxu0 0
      %928 = vmatpush1.bf16.msra.mxu0 0
      %929 = vmatprep.subr.bf16.mxu0 0
      %930 = vmatpush1.bf16.msra.mxu0 0
      %931 = vmatprep.subr.bf16.mxu0 0
      %932 = vmatpush1.bf16.msra.mxu0 0
      %933 = vmatprep.mubr.bf16.mxu0 0
      %934 = vmatmul.mubr.bf16.gmra.mrb[0].mxu0 %v878
      %v935 = vpop.f32.mrb[0].mxu0
      %v936 = vadd.f32 0.0, %v935
      %v937 = vpop.f32.mrb[0].mxu0
      %v938 = vpop.f32.mrb[0].mxu0
      %v939 = vadd.f32 0.0, %v938
      %v940 = vpop.f32.mrb[0].mxu0
      %941 = vmatprep.mubr.bf16.mxu0 0
      %942 = vmatmul.mubr.bf16.gmra.mrb[0].mxu0 %v881
      %v943 = vpop.f32.mrb[0].mxu0
      %v944 = vadd.f32 0.0, %v943
      %v945 = vpop.f32.mrb[0].mxu0
      %v946 = vpop.f32.mrb[0].mxu0
      %v947 = vadd.f32 0.0, %v946
      %v948 = vpop.f32.mrb[0].mxu0
      %949 = vmatprep.mubr.bf16.mxu0 0
      %950 = vmatmul.mubr.bf16.gmra.mrb[0].mxu0 %v884
      %v951 = vpop.f32.mrb[0].mxu0
      %v952 = vadd.f32 0.0, %v951
      %v953 = vpop.f32.mrb[0].mxu0
      %v954 = vpop.f32.mrb[0].mxu0
      %v955 = vadd.f32 0.0, %v954
      %v956 = vpop.f32.mrb[0].mxu0
      %957 = vmatprep.mubr.bf16.mxu0 0
      %958 = vmatmul.mubr.bf16.gmra.mrb[0].mxu0 %v887
      %v959 = vpop.f32.mrb[0].mxu0
      %v960 = vadd.f32 0.0, %v959
      %v961 = vpop.f32.mrb[0].mxu0
      %v962 = vpop.f32.mrb[0].mxu0
      %v963 = vadd.f32 0.0, %v962
      %v964 = vpop.f32.mrb[0].mxu0
      %965 = vmatprep.mubr.bf16.mxu0 0
      %966 = vmatmul.mubr.bf16.gmra.mrb[0].mxu0 %v890
      %v967 = vpop.f32.mrb[0].mxu0
      %v968 = vadd.f32 0.0, %v967
      %v969 = vpop.f32.mrb[0].mxu0
      %v970 = vpop.f32.mrb[0].mxu0
      %v971 = vadd.f32 0.0, %v970
      %v972 = vpop.f32.mrb[0].mxu0
      %973 = vmatprep.mubr.bf16.mxu0 0
      %974 = vmatmul.mubr.bf16.gmra.mrb[0].mxu0 %v893
      %v975 = vpop.f32.mrb[0].mxu0
      %v976 = vadd.f32 0.0, %v975
      %v977 = vpop.f32.mrb[0].mxu0
      %v978 = vpop.f32.mrb[0].mxu0
      %v979 = vadd.f32 0.0, %v978
      %v980 = vpop.f32.mrb[0].mxu0
      %981 = vmatprep.mubr.bf16.mxu0 0
      %982 = vmatmul.mubr.bf16.gmra.mrb[0].mxu0 %v896
      %v983 = vpop.f32.mrb[0].mxu0
      %v984 = vadd.f32 0.0, %v983
      %v985 = vpop.f32.mrb[0].mxu0
      %v986 = vpop.f32.mrb[0].mxu0
      %v987 = vadd.f32 0.0, %v986
      %v988 = vpop.f32.mrb[0].mxu0
      %989 = vmatprep.mubr.bf16.mxu0 0
      %990 = vmatmul.mubr.bf16.gmra.mrb[0].mxu0 %v899
      %v991 = vpop.f32.mrb[0].mxu0
      %v992 = vadd.f32 0.0, %v991
      %v993 = vpop.f32.mrb[0].mxu0
      %v994 = vpop.f32.mrb[0].mxu0
      %v995 = vadd.f32 0.0, %v994
      %v996 = vpop.f32.mrb[0].mxu0
      %997 = vdwg.mxu0
      %v998 = vpack.c.bf16 %v939, %v936
      %v999 = vpack.c.bf16 %v947, %v944
      %v1000 = vpack.c.bf16 %v955, %v952
      %v1001 = vpack.c.bf16 %v963, %v960
      %v1002 = vpack.c.bf16 %v971, %v968
      %v1003 = vpack.c.bf16 %v979, %v976
      %v1004 = vpack.c.bf16 %v987, %v984
      %v1005 = vpack.c.bf16 %v995, %v992
      %v1014 = vunpack.c.l.b16 %v998
      %v1015 = vunpack.c.h.b16 %v998
      %v1016 = vunpack.c.l.b16 %v999
      %v1017 = vunpack.c.h.b16 %v999
      %v1018 = vunpack.c.l.b16 %v1000
      %v1019 = vunpack.c.h.b16 %v1000
      %v1020 = vunpack.c.l.b16 %v1001
      %v1021 = vunpack.c.h.b16 %v1001
      %v1022 = vunpack.c.l.b16 %v1002
      %v1023 = vunpack.c.h.b16 %v1002
      %v1024 = vunpack.c.l.b16 %v1003
      %v1025 = vunpack.c.h.b16 %v1003
      %v1026 = vunpack.c.l.b16 %v1004
      %v1027 = vunpack.c.h.b16 %v1004
      %v1028 = vunpack.c.l.b16 %v1005
      %v1029 = vunpack.c.h.b16 %v1005
      %v1030 = vpack.c.b16 %v1014, %v1014
      %v1031 = vpack.c.b16 %v1015, %v1015
      %v1032 = vpack.c.b16 %v1016, %v1016
      %v1033 = vpack.c.b16 %v1017, %v1017
      %v1034 = vpack.c.b16 %v1018, %v1018
      %v1035 = vpack.c.b16 %v1019, %v1019
      %v1036 = vpack.c.b16 %v1020, %v1020
      %v1037 = vpack.c.b16 %v1021, %v1021
      %v1038 = vpack.c.b16 %v1022, %v1022
      %v1039 = vpack.c.b16 %v1023, %v1023
      %v1040 = vpack.c.b16 %v1024, %v1024
      %v1041 = vpack.c.b16 %v1025, %v1025
      %v1042 = vpack.c.b16 %v1026, %v1026
      %v1043 = vpack.c.b16 %v1027, %v1027
      %v1044 = vpack.c.b16 %v1028, %v1028
      %v1045 = vpack.c.b16 %v1029, %v1029
      %vm1062 = vcmask 519168
      %1063 = vst.msk [vmem:[%s175] sm:$0xf] %vm1062, %v1030
      %1064 = vst.msk [vmem:[%s175 + $0x4] sm:$0xf] %vm1062, %v1031
      %1065 = vst.msk [vmem:[%s175 + $0x8] sm:$0xf] %vm1062, %v1032
      %1066 = vst.msk [vmem:[%s175 + $0xc] sm:$0xf] %vm1062, %v1033
      %1067 = vst.msk [vmem:[%s175 + $0x10] sm:$0xf] %vm1062, %v1034
      %1068 = vst.msk [vmem:[%s175 + $0x14] sm:$0xf] %vm1062, %v1035
      %1069 = vst.msk [vmem:[%s175 + $0x18] sm:$0xf] %vm1062, %v1036
      %1070 = vst.msk [vmem:[%s175 + $0x1c] sm:$0xf] %vm1062, %v1037
      %1071 = vst.msk [vmem:[%s175 + $0x20] sm:$0xf] %vm1062, %v1038
      %1072 = vst.msk [vmem:[%s175 + $0x24] sm:$0xf] %vm1062, %v1039
      %1073 = vst.msk [vmem:[%s175 + $0x28] sm:$0xf] %vm1062, %v1040
      %1074 = vst.msk [vmem:[%s175 + $0x2c] sm:$0xf] %vm1062, %v1041
      %1075 = vst.msk [vmem:[%s175 + $0x30] sm:$0xf] %vm1062, %v1042
      %1076 = vst.msk [vmem:[%s175 + $0x34] sm:$0xf] %vm1062, %v1043
      %1077 = vst.msk [vmem:[%s175 + $0x38] sm:$0xf] %vm1062, %v1044
      %1078 = vst.msk [vmem:[%s175 + $0x3c] sm:$0xf] %vm1062, %v1045
      %s1079 = smul.u32 16, %s14
      %p1080 = scmp.lt.s32.totalorder %s1079, 63
      %s1081 = scalar_select %p1080, %s1079, 63
      %s1082 = smul.addr %s1081, 4
      %s1083 = scalar_lea.vmem %s3, %s1082
      // Predicated region
      $region33: #{graphsage_forward.4} parent=31 // pred_check
        %p1084 = pneg %p100
      $region34: #{graphsage_forward.4} parent=31 // pred_check_branch
        %1086 = sbr.rel (%p1084) target = $region36
      $region35: #{graphsage_forward.4} parent=31 // pred_region
        %s1087 = smul.u32 16, %s14
      $region36: #{graphsage_forward.4} parent=31 // pred_fallthru
        _
    $region32: #{graphsage_forward.4} parent=5 // pred_fallthru
      _
    %p1088 = scmp.le.s32.totalorder 2, %s9
    // Predicated region
    $region37: #{graphsage_forward.4} parent=5 // pred_check
      %p1089 = pneg %p1088
    $region38: #{graphsage_forward.4} parent=5 // pred_check_branch
      %1091 = sbr.rel (%p1089) target = $region40
    $region39: #{graphsage_forward.4} parent=5 // pred_region
      %s1092 = ssub.s32 %s9, 2
      // Predicated region
      $region41: #{graphsage_forward.4} parent=39 // pred_check
        %p1093 = pneg %p106
      $region42: #{graphsage_forward.4} parent=39 // pred_check_branch
        %1095 = sbr.rel (%p1093) target = $region44
      $region43: #{graphsage_forward.4} parent=39 // pred_region
        %s1096 = smul.u32 16, %s15
        %p1097 = scmp.lt.s32.totalorder %s1096, 63
        %s1098 = scalar_select %p1097, %s1096, 63
        %s1099 = smul.addr %s1098, 4
        %s1100 = scalar_lea.vmem %s3, %s1099
      $region44: #{graphsage_forward.4} parent=39 // pred_fallthru
        _
    $region40: #{graphsage_forward.4} parent=5 // pred_fallthru
      _
  $region6: #{graphsage_forward.4} parent=0 // loop_footer
    %s13 = sadd.s32 1, %s9
  $region7: #{graphsage_forward.4} parent=0 // loop_footer_branch
    %8 = sbr.rel target = $region3
  $region8: #{graphsage_forward.4} parent=0 // loop_exit
    _

// kernel: graphsage_forward.5
$region0: #{graphsage_forward.5}
  #allocation0 [shape = 'u32[]', space=smem, size = 0x4, offset = 0x4, fixed_abs, tag = 'smem constant byte address 0x4 - core index']
  #allocation1 [shape = 'u32[144,128]{1,0:T(1,128)}', space=vmem, size = 0x12000, scoped, tag = 'internal scratch']
  %s0 = inlined_call_operand.vmem [shape: bf16[16,512], index: 0, kind: input, shape index: {}]
  %s1 = inlined_call_operand.vmem [shape: bf16[512,64], index: 1, kind: input, shape index: {}]
  %s2 = inlined_call_operand.vmem [shape: bf16[64,128], index: 2, kind: input, shape index: {}]
  %s3 = inlined_call_operand.vmem [shape: f32[16,128], index: 3, kind: output, shape index: {}]
  %s4 = sld [smem:[#allocation0]]
  $region22: #{graphsage_forward.5} parent=0
    _
  %s6 = ssub.s32 1, %s4
  %s7 = scalar_select 0, %s6, %s4
  // Predicated region
  $region2: #{graphsage_forward.5} parent=0 // pred_check
    _
  $region3: #{graphsage_forward.5} parent=0 // pred_check_branch
    %9 = sbr.rel (0) target = $region5
  $region4: #{graphsage_forward.5} parent=0 // pred_region
    _
  $region5: #{graphsage_forward.5} parent=0 // pred_fallthru
    _
  // Predicated region
  $region6: #{graphsage_forward.5} parent=0 // pred_check
    _
  $region7: #{graphsage_forward.5} parent=0 // pred_check_branch
    %11 = sbr.rel (0) target = $region9
  $region8: #{graphsage_forward.5} parent=0 // pred_region
    _
  $region9: #{graphsage_forward.5} parent=0 // pred_fallthru
    _
  // Predicated region
  $region10: #{graphsage_forward.5} parent=0 // pred_check
    _
  $region11: #{graphsage_forward.5} parent=0 // pred_check_branch
    %13 = sbr.rel (0) target = $region13
  $region12: #{graphsage_forward.5} parent=0 // pred_region
    _
  $region13: #{graphsage_forward.5} parent=0 // pred_fallthru
    _
  %v15 = vld [vmem:[%s0] sm:$0xff]
  %v16 = vld [vmem:[%s0 + $0x8] sm:$0xff]
  %v17 = vld [vmem:[%s0 + $0x10] sm:$0xff]
  %v18 = vld [vmem:[%s0 + $0x18] sm:$0xff]
  %v19 = vld [vmem:[%s1] sm:$0xf]
  %v20 = vld [vmem:[%s1 + $0x4] sm:$0xf]
  %v21 = vld [vmem:[%s1 + $0x8] sm:$0xf]
  %v22 = vld [vmem:[%s1 + $0xc] sm:$0xf]
  %v23 = vld [vmem:[%s1 + $0x10] sm:$0xf]
  %v24 = vld [vmem:[%s1 + $0x14] sm:$0xf]
  %v25 = vld [vmem:[%s1 + $0x18] sm:$0xf]
  %v26 = vld [vmem:[%s1 + $0x1c] sm:$0xf]
  %v27 = vld [vmem:[%s1 + $0x20] sm:$0xf]
  %v28 = vld [vmem:[%s1 + $0x24] sm:$0xf]
  %v29 = vld [vmem:[%s1 + $0x28] sm:$0xf]
  %v30 = vld [vmem:[%s1 + $0x2c] sm:$0xf]
  %v31 = vld [vmem:[%s1 + $0x30] sm:$0xf]
  %v32 = vld [vmem:[%s1 + $0x34] sm:$0xf]
  %v33 = vld [vmem:[%s1 + $0x38] sm:$0xf]
  %v34 = vld [vmem:[%s1 + $0x3c] sm:$0xf]
  %v35 = vld [vmem:[%s1 + $0x40] sm:$0xf]
  %v36 = vld [vmem:[%s1 + $0x44] sm:$0xf]
  %v37 = vld [vmem:[%s1 + $0x48] sm:$0xf]
  %v38 = vld [vmem:[%s1 + $0x4c] sm:$0xf]
  %v39 = vld [vmem:[%s1 + $0x50] sm:$0xf]
  %v40 = vld [vmem:[%s1 + $0x54] sm:$0xf]
  %v41 = vld [vmem:[%s1 + $0x58] sm:$0xf]
  %v42 = vld [vmem:[%s1 + $0x5c] sm:$0xf]
  %v43 = vld [vmem:[%s1 + $0x60] sm:$0xf]
  %v44 = vld [vmem:[%s1 + $0x64] sm:$0xf]
  %v45 = vld [vmem:[%s1 + $0x68] sm:$0xf]
  %v46 = vld [vmem:[%s1 + $0x6c] sm:$0xf]
  %v47 = vld [vmem:[%s1 + $0x70] sm:$0xf]
  %v48 = vld [vmem:[%s1 + $0x74] sm:$0xf]
  %v49 = vld [vmem:[%s1 + $0x78] sm:$0xf]
  %v50 = vld [vmem:[%s1 + $0x7c] sm:$0xf]
  %v51 = vld [vmem:[%s1 + $0x80] sm:$0xf]
  %v52 = vld [vmem:[%s1 + $0x84] sm:$0xf]
  %v53 = vld [vmem:[%s1 + $0x88] sm:$0xf]
  %v54 = vld [vmem:[%s1 + $0x8c] sm:$0xf]
  %v55 = vld [vmem:[%s1 + $0x90] sm:$0xf]
  %v56 = vld [vmem:[%s1 + $0x94] sm:$0xf]
  %v57 = vld [vmem:[%s1 + $0x98] sm:$0xf]
  %v58 = vld [vmem:[%s1 + $0x9c] sm:$0xf]
  %v59 = vld [vmem:[%s1 + $0xa0] sm:$0xf]
  %v60 = vld [vmem:[%s1 + $0xa4] sm:$0xf]
  %v61 = vld [vmem:[%s1 + $0xa8] sm:$0xf]
  %v62 = vld [vmem:[%s1 + $0xac] sm:$0xf]
  %v63 = vld [vmem:[%s1 + $0xb0] sm:$0xf]
  %v64 = vld [vmem:[%s1 + $0xb4] sm:$0xf]
  %v65 = vld [vmem:[%s1 + $0xb8] sm:$0xf]
  %v66 = vld [vmem:[%s1 + $0xbc] sm:$0xf]
  %v67 = vld [vmem:[%s1 + $0xc0] sm:$0xf]
  %v68 = vld [vmem:[%s1 + $0xc4] sm:$0xf]
  %v69 = vld [vmem:[%s1 + $0xc8] sm:$0xf]
  %v70 = vld [vmem:[%s1 + $0xcc] sm:$0xf]
  %v71 = vld [vmem:[%s1 + $0xd0] sm:$0xf]
  %v72 = vld [vmem:[%s1 + $0xd4] sm:$0xf]
  %v73 = vld [vmem:[%s1 + $0xd8] sm:$0xf]
  %v74 = vld [vmem:[%s1 + $0xdc] sm:$0xf]
  %v75 = vld [vmem:[%s1 + $0xe0] sm:$0xf]
  %v76 = vld [vmem:[%s1 + $0xe4] sm:$0xf]
  %v77 = vld [vmem:[%s1 + $0xe8] sm:$0xf]
  %v78 = vld [vmem:[%s1 + $0xec] sm:$0xf]
  %v79 = vld [vmem:[%s1 + $0xf0] sm:$0xf]
  %v80 = vld [vmem:[%s1 + $0xf4] sm:$0xf]
  %v81 = vld [vmem:[%s1 + $0xf8] sm:$0xf]
  %v82 = vld [vmem:[%s1 + $0xfc] sm:$0xf]
  %v87 = vunpack.c.l.b16 %v15
  %v88 = vunpack.c.h.b16 %v15
  %v89 = vunpack.c.l.b16 %v16
  %v90 = vunpack.c.h.b16 %v16
  %v91 = vunpack.c.l.b16 %v17
  %v92 = vunpack.c.h.b16 %v17
  %v93 = vunpack.c.l.b16 %v18
  %v94 = vunpack.c.h.b16 %v18
  %v95 = vpack.c.b16 %v91, %v87
  %v96 = vpack.c.b16 %v92, %v88
  %v97 = vpack.c.b16 %v93, %v89
  %v98 = vpack.c.b16 %v94, %v90
  %v167 = vunpack.c.l.b16 %v19
  %v168 = vunpack.c.l.b16 %v20
  %v169 = vunpack.c.l.b16 %v21
  %v170 = vunpack.c.l.b16 %v22
  %v171 = vunpack.c.l.b16 %v23
  %v172 = vunpack.c.l.b16 %v24
  %v173 = vunpack.c.l.b16 %v25
  %v174 = vunpack.c.l.b16 %v26
  %v175 = vunpack.c.l.b16 %v27
  %v176 = vunpack.c.l.b16 %v28
  %v177 = vunpack.c.l.b16 %v29
  %v178 = vunpack.c.l.b16 %v30
  %v179 = vunpack.c.l.b16 %v31
  %v180 = vunpack.c.l.b16 %v32
  %v181 = vunpack.c.l.b16 %v33
  %v182 = vunpack.c.l.b16 %v34
  %v183 = vunpack.c.l.b16 %v35
  %v184 = vunpack.c.l.b16 %v36
  %v185 = vunpack.c.l.b16 %v37
  %v186 = vunpack.c.l.b16 %v38
  %v187 = vunpack.c.l.b16 %v39
  %v188 = vunpack.c.l.b16 %v40
  %v189 = vunpack.c.l.b16 %v41
  %v190 = vunpack.c.l.b16 %v42
  %v191 = vunpack.c.l.b16 %v43
  %v192 = vunpack.c.l.b16 %v44
  %v193 = vunpack.c.l.b16 %v45
  %v194 = vunpack.c.l.b16 %v46
  %v195 = vunpack.c.l.b16 %v47
  %v196 = vunpack.c.l.b16 %v48
  %v197 = vunpack.c.l.b16 %v49
  %v198 = vunpack.c.l.b16 %v50
  %v199 = vunpack.c.l.b16 %v51
  %v200 = vunpack.c.l.b16 %v52
  %v201 = vunpack.c.l.b16 %v53
  %v202 = vunpack.c.l.b16 %v54
  %v203 = vunpack.c.l.b16 %v55
  %v204 = vunpack.c.l.b16 %v56
  %v205 = vunpack.c.l.b16 %v57
  %v206 = vunpack.c.l.b16 %v58
  %v207 = vunpack.c.l.b16 %v59
  %v208 = vunpack.c.l.b16 %v60
  %v209 = vunpack.c.l.b16 %v61
  %v210 = vunpack.c.l.b16 %v62
  %v211 = vunpack.c.l.b16 %v63
  %v212 = vunpack.c.l.b16 %v64
  %v213 = vunpack.c.l.b16 %v65
  %v214 = vunpack.c.l.b16 %v66
  %v215 = vunpack.c.l.b16 %v67
  %v216 = vunpack.c.l.b16 %v68
  %v217 = vunpack.c.l.b16 %v69
  %v218 = vunpack.c.l.b16 %v70
  %v219 = vunpack.c.l.b16 %v71
  %v220 = vunpack.c.l.b16 %v72
  %v221 = vunpack.c.l.b16 %v73
  %v222 = vunpack.c.l.b16 %v74
  %v223 = vunpack.c.l.b16 %v75
  %v224 = vunpack.c.l.b16 %v76
  %v225 = vunpack.c.l.b16 %v77
  %v226 = vunpack.c.l.b16 %v78
  %v227 = vunpack.c.l.b16 %v79
  %v228 = vunpack.c.l.b16 %v80
  %v229 = vunpack.c.l.b16 %v81
  %v230 = vunpack.c.l.b16 %v82
  %v231 = vpack.c.b16 %v168, %v167
  %v232 = vpack.c.b16 %v170, %v169
  %v233 = vpack.c.b16 %v172, %v171
  %v234 = vpack.c.b16 %v174, %v173
  %v235 = vpack.c.b16 %v176, %v175
  %v236 = vpack.c.b16 %v178, %v177
  %v237 = vpack.c.b16 %v180, %v179
  %v238 = vpack.c.b16 %v182, %v181
  %v239 = vpack.c.b16 %v184, %v183
  %v240 = vpack.c.b16 %v186, %v185
  %v241 = vpack.c.b16 %v188, %v187
  %v242 = vpack.c.b16 %v190, %v189
  %v243 = vpack.c.b16 %v192, %v191
  %v244 = vpack.c.b16 %v194, %v193
  %v245 = vpack.c.b16 %v196, %v195
  %v246 = vpack.c.b16 %v198, %v197
  %v247 = vpack.c.b16 %v200, %v199
  %v248 = vpack.c.b16 %v202, %v201
  %v249 = vpack.c.b16 %v204, %v203
  %v250 = vpack.c.b16 %v206, %v205
  %v251 = vpack.c.b16 %v208, %v207
  %v252 = vpack.c.b16 %v210, %v209
  %v253 = vpack.c.b16 %v212, %v211
  %v254 = vpack.c.b16 %v214, %v213
  %v255 = vpack.c.b16 %v216, %v215
  %v256 = vpack.c.b16 %v218, %v217
  %v257 = vpack.c.b16 %v220, %v219
  %v258 = vpack.c.b16 %v222, %v221
  %v259 = vpack.c.b16 %v224, %v223
  %v260 = vpack.c.b16 %v226, %v225
  %v261 = vpack.c.b16 %v228, %v227
  %v262 = vpack.c.b16 %v230, %v229
  %295 = vmatprep.subr.bf16.mxu0 0
  %296 = vmatpush1.bf16.msra.mxu0 %v231
  %297 = vmatprep.subr.bf16.mxu0 0
  %298 = vmatpush1.bf16.msra.mxu0 %v232
  %299 = vmatprep.subr.bf16.mxu0 0
  %300 = vmatpush1.bf16.msra.mxu0 %v233
  %301 = vmatprep.subr.bf16.mxu0 0
  %302 = vmatpush1.bf16.msra.mxu0 %v234
  %303 = vmatprep.subr.bf16.mxu0 0
  %304 = vmatpush1.bf16.msra.mxu0 %v235
  %305 = vmatprep.subr.bf16.mxu0 0
  %306 = vmatpush1.bf16.msra.mxu0 %v236
  %307 = vmatprep.subr.bf16.mxu0 0
  %308 = vmatpush1.bf16.msra.mxu0 %v237
  %309 = vmatprep.subr.bf16.mxu0 0
  %310 = vmatpush1.bf16.msra.mxu0 %v238
  %311 = vmatprep.subr.bf16.mxu0 0
  %312 = vmatpush1.bf16.msra.mxu0 %v239
  %313 = vmatprep.subr.bf16.mxu0 0
  %314 = vmatpush1.bf16.msra.mxu0 %v240
  %315 = vmatprep.subr.bf16.mxu0 0
  %316 = vmatpush1.bf16.msra.mxu0 %v241
  %317 = vmatprep.subr.bf16.mxu0 0
  %318 = vmatpush1.bf16.msra.mxu0 %v242
  %319 = vmatprep.subr.bf16.mxu0 0
  %320 = vmatpush1.bf16.msra.mxu0 %v243
  %321 = vmatprep.subr.bf16.mxu0 0
  %322 = vmatpush1.bf16.msra.mxu0 %v244
  %323 = vmatprep.subr.bf16.mxu0 0
  %324 = vmatpush1.bf16.msra.mxu0 %v245
  %325 = vmatprep.subr.bf16.mxu0 0
  %326 = vmatpush1.bf16.msra.mxu0 %v246
  %327 = vmatprep.mubr.bf16.mxu0 %v96
  %328 = vmatmul.mubr.bf16.gmra.mrb[0].mxu0 %v95
  %v329 = vpop.f32.mrb[0].mxu0
  %v330 = vadd.f32 0.0, %v329
  %v331 = vpop.f32.mrb[0].mxu0
  %v332 = vpop.f32.mrb[0].mxu0
  %v333 = vadd.f32 0.0, %v332
  %v334 = vpop.f32.mrb[0].mxu0
  %335 = vdwg.mxu0
  %336 = vmatprep.subr.bf16.mxu0 0
  %337 = vmatpush1.bf16.msra.mxu0 %v247
  %338 = vmatprep.subr.bf16.mxu0 0
  %339 = vmatpush1.bf16.msra.mxu0 %v248
  %340 = vmatprep.subr.bf16.mxu0 0
  %341 = vmatpush1.bf16.msra.mxu0 %v249
  %342 = vmatprep.subr.bf16.mxu0 0
  %343 = vmatpush1.bf16.msra.mxu0 %v250
  %344 = vmatprep.subr.bf16.mxu0 0
  %345 = vmatpush1.bf16.msra.mxu0 %v251
  %346 = vmatprep.subr.bf16.mxu0 0
  %347 = vmatpush1.bf16.msra.mxu0 %v252
  %348 = vmatprep.subr.bf16.mxu0 0
  %349 = vmatpush1.bf16.msra.mxu0 %v253
  %350 = vmatprep.subr.bf16.mxu0 0
  %351 = vmatpush1.bf16.msra.mxu0 %v254
  %352 = vmatprep.subr.bf16.mxu0 0
  %353 = vmatpush1.bf16.msra.mxu0 %v255
  %354 = vmatprep.subr.bf16.mxu0 0
  %355 = vmatpush1.bf16.msra.mxu0 %v256
  %356 = vmatprep.subr.bf16.mxu0 0
  %357 = vmatpush1.bf16.msra.mxu0 %v257
  %358 = vmatprep.subr.bf16.mxu0 0
  %359 = vmatpush1.bf16.msra.mxu0 %v258
  %360 = vmatprep.subr.bf16.mxu0 0
  %361 = vmatpush1.bf16.msra.mxu0 %v259
  %362 = vmatprep.subr.bf16.mxu0 0
  %363 = vmatpush1.bf16.msra.mxu0 %v260
  %364 = vmatprep.subr.bf16.mxu0 0
  %365 = vmatpush1.bf16.msra.mxu0 %v261
  %366 = vmatprep.subr.bf16.mxu0 0
  %367 = vmatpush1.bf16.msra.mxu0 %v262
  %368 = vmatprep.mubr.bf16.mxu0 %v98
  %369 = vmatmul.mubr.bf16.gmra.mrb[0].mxu0 %v97
  %v370 = vpop.f32.mrb[0].mxu0
  %v371 = vadd.f32 %v330, %v370
  %v372 = vpop.f32.mrb[0].mxu0
  %v373 = vpop.f32.mrb[0].mxu0
  %v374 = vadd.f32 %v333, %v373
  %v375 = vpop.f32.mrb[0].mxu0
  %376 = vdwg.mxu0
  %v377 = vmax.f32 %v371, 0.0
  %v378 = vmax.f32 %v374, 0.0
  %v379 = vpack.c.bf16 %v378, %v377
  %v380 = vld [vmem:[%s2] sm:$0xf]
  %v381 = vld [vmem:[%s2 + $0x4] sm:$0xf]
  %v382 = vld [vmem:[%s2 + $0x8] sm:$0xf]
  %v383 = vld [vmem:[%s2 + $0xc] sm:$0xf]
  %v384 = vld [vmem:[%s2 + $0x10] sm:$0xf]
  %v385 = vld [vmem:[%s2 + $0x14] sm:$0xf]
  %v386 = vld [vmem:[%s2 + $0x18] sm:$0xf]
  %v387 = vld [vmem:[%s2 + $0x1c] sm:$0xf]
  %v396 = vunpack.c.l.b16 %v380
  %v397 = vunpack.c.l.b16 %v381
  %v398 = vunpack.c.l.b16 %v382
  %v399 = vunpack.c.l.b16 %v383
  %v400 = vunpack.c.l.b16 %v384
  %v401 = vunpack.c.l.b16 %v385
  %v402 = vunpack.c.l.b16 %v386
  %v403 = vunpack.c.l.b16 %v387
  %v404 = vpack.c.b16 %v397, %v396
  %v405 = vpack.c.b16 %v399, %v398
  %v406 = vpack.c.b16 %v401, %v400
  %v407 = vpack.c.b16 %v403, %v402
  %vm412 = vcmask 523264
  %v414 = vsel %vm412, %v379, 0
  %416 = vmatprep.subr.bf16.mxu0 0
  %417 = vmatpush1.bf16.msra.mxu0 %v404
  %418 = vmatprep.subr.bf16.mxu0 0
  %419 = vmatpush1.bf16.msra.mxu0 %v405
  %420 = vmatprep.subr.bf16.mxu0 0
  %421 = vmatpush1.bf16.msra.mxu0 %v406
  %422 = vmatprep.subr.bf16.mxu0 0
  %423 = vmatpush1.bf16.msra.mxu0 %v407
  %424 = vmatprep.subr.bf16.mxu0 0
  %425 = vmatpush1.bf16.msra.mxu0 0
  %426 = vmatprep.subr.bf16.mxu0 0
  %427 = vmatpush1.bf16.msra.mxu0 0
  %428 = vmatprep.subr.bf16.mxu0 0
  %429 = vmatpush1.bf16.msra.mxu0 0
  %430 = vmatprep.subr.bf16.mxu0 0
  %431 = vmatpush1.bf16.msra.mxu0 0
  %432 = vmatprep.subr.bf16.mxu0 0
  %433 = vmatpush1.bf16.msra.mxu0 0
  %434 = vmatprep.subr.bf16.mxu0 0
  %435 = vmatpush1.bf16.msra.mxu0 0
  %436 = vmatprep.subr.bf16.mxu0 0
  %437 = vmatpush1.bf16.msra.mxu0 0
  %438 = vmatprep.subr.bf16.mxu0 0
  %439 = vmatpush1.bf16.msra.mxu0 0
  %440 = vmatprep.subr.bf16.mxu0 0
  %441 = vmatpush1.bf16.msra.mxu0 0
  %442 = vmatprep.subr.bf16.mxu0 0
  %443 = vmatpush1.bf16.msra.mxu0 0
  %444 = vmatprep.subr.bf16.mxu0 0
  %445 = vmatpush1.bf16.msra.mxu0 0
  %446 = vmatprep.subr.bf16.mxu0 0
  %447 = vmatpush1.bf16.msra.mxu0 0
  %448 = vmatprep.mubr.bf16.mxu0 0
  %449 = vmatmul.mubr.bf16.gmra.mrb[0].mxu0 %v414
  %v450 = vpop.f32.mrb[0].mxu0
  %v451 = vadd.f32 0.0, %v450
  %v452 = vpop.f32.mrb[0].mxu0
  %v453 = vpop.f32.mrb[0].mxu0
  %v454 = vadd.f32 0.0, %v453
  %v455 = vpop.f32.mrb[0].mxu0
  %456 = vdwg.mxu0
  %v457 = vxor.u32 %v451, 2147483648
  %v458 = vxor.u32 %v454, 2147483648
  %v459 = vmul.f32 %v457, 1.442695
  %v460 = vpow.pop %v459
  %v461 = vmul.f32 %v458, 1.442695
  %v462 = vpow.pop %v461
  %v463 = vadd.f32 %v460, 1.0
  %v464 = vadd.f32 %v462, 1.0
  %v465 = vrcp.pop %v463
  %v466 = vmul.f32 1.0, %v465
  %v467 = vrcp.pop %v464
  %v468 = vmul.f32 1.0, %v467
  %469 = vst [vmem:[%s3] sm:$0xff] %v466
  %470 = vst [vmem:[%s3 + $0x8] sm:$0xff] %v468
  // Predicated region
  $region14: #{graphsage_forward.5} parent=0 // pred_check
    _
  $region15: #{graphsage_forward.5} parent=0 // pred_check_branch
    %472 = sbr.rel (0) target = $region17
  $region16: #{graphsage_forward.5} parent=0 // pred_region
    _
  $region17: #{graphsage_forward.5} parent=0 // pred_fallthru
    _
  // Predicated region
  $region18: #{graphsage_forward.5} parent=0 // pred_check
    _
  $region19: #{graphsage_forward.5} parent=0 // pred_check_branch
    %474 = sbr.rel (0) target = $region21
  $region20: #{graphsage_forward.5} parent=0 // pred_region
    _
  $region21: #{graphsage_forward.5} parent=0 // pred_fallthru
    _

</llo_original>
